<compile_context>
chip_gen: v7x
topology: tpu7x:2x2x1
jax: 0.10.0
libtpu: 0.0.40
codegen_flags: <defaults>
</compile_context>

<pallas_src>
import functools

import jax
import jax.numpy as jnp
from jax.experimental import pallas as pl
from jax.experimental.pallas import tpu as pltpu

KERNEL_SIZES = (2, 3, 4)
HIDDEN = 768


def _round_up(x, m):
    return (x + m - 1) // m * m


def _pick_batch_tile(b):
    """Batch rows per grid step: big enough to amortize the ~0.35us/step grid
    overhead and resident-weight pushes, >= 2 grid steps when the batch allows
    (so v7x's 2 TensorCores both get work), capped at 256 rows."""
    b8 = _round_up(b, 8)
    if b8 <= 8:
        return 8
    return min(256, _round_up((b8 + 1) // 2, 8))


def _pick_chunk(tb, lp):
    """Rows of the batch tile processed per inner iteration; keeps the f32 conv
    intermediate (~tbc*lp*128*4 B) close to the vreg file instead of streaming
    a multi-MiB tensor through VMEM."""
    for c in (32, 16, 8):
        if tb % c == 0 and c * lp <= 256:
            return c
    return 8


def _charcnn_kernel(emb_ref, w_ref, b_ref, mask_ref, wh_ref, bh_ref,
                    out_ref, pooled_ref, *, k_max, lp, tbc):
    """One grid step = TB batch rows.

    Inner loop over batch chunks: k_max tap matmuls (in-kernel im2col) + bias +
    ReLU + time-validity mask + max-over-time, pooled into a [TB, C] scratch.
    Epilogue: one fused highway matmul and a single lane-dense [TB, 768] store.
    """
    tb = emb_ref.shape[0]
    c_pad = w_ref.shape[2]

    @pl.loop(0, tb // tbc)
    def _(c):
        start = pl.multiple_of(c * tbc, tbc)
        acc = jnp.zeros((tbc * lp, c_pad), jnp.float32)
        for j in range(k_max):                       # static tap loop, weights resident
            xj = emb_ref[pl.ds(start, tbc), pl.ds(j, lp), :]        # [tbc, lp, E] bf16
            acc = acc + jnp.dot(xj.reshape(tbc * lp, -1), w_ref[j],
                                preferred_element_type=jnp.float32)
        conv = jnp.maximum(acc + b_ref[...], 0.0)                   # bias + ReLU (f32)
        # Zero invalid tail time-steps per branch (post-ReLU, so 0 is neutral
        # for the max), then max-over-time.
        conv = conv.reshape(tbc, lp, c_pad) * mask_ref[...]
        pooled_ref[pl.ds(start, tbc), :] = jnp.max(conv, axis=1)    # [tbc, C] f32

    # concat + Linear fused: pooled stays f32 (no extra activation quant),
    # one [TB, C] x [C, 768] matmul, one full-block lane-dense store.
    out = jnp.dot(pooled_ref[...], wh_ref[...],
                  preferred_element_type=jnp.float32) + bh_ref[...]
    out_ref[...] = out.astype(out_ref.dtype)


def _fuse_params(params, kernel_sizes, seq_len):
    """Fold the conv branches into one lane-padded tap-weight slab, build the
    time-validity mask and the row-padded highway weight.  Call ONCE and reuse
    (hoisted out of the per-call forward path)."""
    kernel_sizes = tuple(kernel_sizes)
    k_max, k_min = max(kernel_sizes), min(kernel_sizes)
    if seq_len < k_max:
        raise ValueError(f"seq_len={seq_len} < max kernel size {k_max} "
                         "(PyTorch Conv1d would error here too)")
    emb_dim = params["emb_table"].shape[1]
    nk = params[f"w{kernel_sizes[0]}"].shape[-1]
    c_total = len(kernel_sizes) * nk
    c_pad = _round_up(max(c_total, 128), 128)
    lp = _round_up(seq_len - k_min + 1, 8)           # padded pooled-time extent
    l_ext = _round_up(lp + k_max - 1, 8)             # padded embedding time extent

    w_fused = jnp.zeros((k_max, emb_dim, c_pad), jnp.float32)
    b_fused = jnp.zeros((1, c_pad), jnp.float32)
    valid = jnp.zeros((c_pad,), jnp.int32)           # valid time-steps per channel
    for i, k in enumerate(kernel_sizes):
        w_fused = w_fused.at[:k, :, i * nk:(i + 1) * nk].set(params[f"w{k}"])
        b_fused = b_fused.at[:, i * nk:(i + 1) * nk].set(params[f"b{k}"])
        valid = valid.at[i * nk:(i + 1) * nk].set(seq_len - k + 1)
    mask = (jnp.arange(lp)[:, None] < valid[None, :]).astype(jnp.float32)  # [LP, C_pad]

    hidden = params["wh"].shape[1]
    wh_pad = jnp.zeros((c_pad, hidden), jnp.float32).at[:c_total, :].set(params["wh"])

    arrays = {
        "emb": params["emb_table"].astype(jnp.bfloat16),   # bf16 halves main HBM stream
        "w": w_fused.astype(jnp.bfloat16),                 # [k_max, E, C_pad] tap weights
        "b": b_fused,                                      # [1, C_pad] f32
        "mask": mask,                                      # [LP, C_pad] f32
        "wh": wh_pad,                                      # [C_pad, 768] f32 (pooled stays f32)
        "bh": params["bh"].astype(jnp.float32).reshape(1, hidden),
    }
    cfg = dict(k_max=k_max, lp=lp, l_ext=l_ext, seq_len=seq_len, hidden=hidden)
    return arrays, cfg


def charcnn_forward(char_ids, arrays, *, k_max, lp, l_ext, seq_len, hidden):
    b, l = char_ids.shape
    assert l == seq_len, (l, seq_len)
    emb_dim = arrays["emb"].shape[1]
    c_pad = arrays["w"].shape[2]

    tb = _pick_batch_tile(b)
    b_pad = _round_up(max(b, tb), tb)
    tbc = _pick_chunk(tb, lp)

    # Single fused gather on zero-padded ids -> raw embedding tiles
    # [B_pad, L_ext, E] bf16.  No host-side im2col (the 4x window expansion is
    # done in-kernel from this 1x-sized stream).
    # TODO(synk): the gather itself could move in-kernel via scalar-prefetched
    # ids + manual DMA to skip even this single HBM materialization.
    ids_ext = jnp.pad(char_ids, ((0, b_pad - b), (0, l_ext - l)))
    emb_ext = jnp.take(arrays["emb"], ids_ext, axis=0)

    # Explicit VMEM budget (double-buffered blocks + resident weights) with
    # headroom, capped well under v7x's 32 MiB scoped / 64 MiB physical VMEM.
    vmem_est = 2 * (tb * l_ext * emb_dim * 2 + tb * hidden * 4
                    + arrays["w"].size * 2 + arrays["mask"].size * 4
                    + arrays["wh"].size * 4 + 2 * c_pad * 4 + hidden * 4)
    vmem_est += tb * c_pad * 4                       # pooled scratch
    vmem_limit = int(min(max(2 * vmem_est, 16 << 20), 24 << 20))

    kernel = functools.partial(_charcnn_kernel, k_max=k_max, lp=lp, tbc=tbc)
    out = pl.pallas_call(
        kernel,
        out_shape=jax.ShapeDtypeStruct((b_pad, hidden), jnp.float32),
        grid=(b_pad // tb,),
        in_specs=[
            pl.BlockSpec((tb, l_ext, emb_dim), lambda i: (i, 0, 0)),    # raw emb tile
            pl.BlockSpec((k_max, emb_dim, c_pad), lambda i: (0, 0, 0)), # fused tap weights
            pl.BlockSpec((1, c_pad), lambda i: (0, 0)),                 # fused conv bias
            pl.BlockSpec((lp, c_pad), lambda i: (0, 0)),                # time-validity mask
            pl.BlockSpec((c_pad, hidden), lambda i: (0, 0)),            # highway weight
            pl.BlockSpec((1, hidden), lambda i: (0, 0)),                # highway bias
        ],
        out_specs=pl.BlockSpec((tb, hidden), lambda i: (i, 0)),
        scratch_shapes=[pltpu.VMEM((tb, c_pad), jnp.float32)],          # pooled features
        compiler_params=pltpu.CompilerParams(
            dimension_semantics=("parallel",),
            vmem_limit_bytes=vmem_limit),
    )(emb_ext, arrays["w"], arrays["b"], arrays["mask"], arrays["wh"], arrays["bh"])
    return out[:b]


def init_params(key, vocab, emb_dim, kernel_sizes, num_kernels, hidden=HIDDEN):
    """Deterministic synthetic parameters matching the module's shapes."""
    keys = jax.random.split(key, 3 + 2 * len(kernel_sizes))
    params = {"emb_table": jax.random.normal(keys[0], (vocab, emb_dim), jnp.float32)}
    for i, k in enumerate(kernel_sizes):
        fan_in = float(emb_dim * k)
        params[f"w{k}"] = (jax.random.normal(keys[1 + 2 * i],
                                             (k, emb_dim, num_kernels), jnp.float32)
                           / jnp.sqrt(fan_in))
        params[f"b{k}"] = 0.01 * jax.random.normal(keys[2 + 2 * i],
                                                   (1, num_kernels), jnp.float32)
    feat = len(kernel_sizes) * num_kernels
    params["wh"] = jax.random.normal(keys[-2], (feat, hidden), jnp.float32) / jnp.sqrt(float(feat))
    params["bh"] = 0.01 * jax.random.normal(keys[-1], (1, hidden), jnp.float32)
    return params


def charcnn_ref(char_ids, params, kernel_sizes, num_kernels):
    """Independent pure-JAX reference using lax conv in PyTorch's NCL layout."""
    emb = params["emb_table"][char_ids].astype(jnp.float32)     # [B, L, E]
    x = jnp.transpose(emb, (0, 2, 1))                           # [B, E, L]
    pooled = []
    for k in kernel_sizes:
        w = jnp.transpose(params[f"w{k}"], (2, 1, 0))           # [NK, E, k] (OIH)
        y = jax.lax.conv_general_dilated(x, w, (1,), "VALID",
                                         dimension_numbers=("NCH", "OIH", "NCH"))
        y = y + params[f"b{k}"].reshape(1, num_kernels, 1)
        y = jax.nn.relu(y)
        pooled.append(jnp.max(y, axis=2))                       # [B, NK]
    feat = jnp.concatenate(pooled, axis=1)                      # [B, F]
    return feat @ params["wh"] + params["bh"]                   # [B, 768]


def _bf16_round(x):
    return x.astype(jnp.bfloat16).astype(jnp.float32)


if __name__ == "__main__":
    B, L = 2, 16
    VOCAB, EMB_DIM, NUM_KERNELS = 50, 32, 8

    key = jax.random.PRNGKey(0)
    kp, ip = jax.random.split(key)
    params = init_params(kp, VOCAB, EMB_DIM, KERNEL_SIZES, NUM_KERNELS)
    char_ids = jax.random.randint(ip, (B, L), 0, VOCAB, dtype=jnp.int32)

    # Fused / padded constants built ONCE, outside the per-call forward path.
    arrays, cfg = _fuse_params(params, KERNEL_SIZES, L)
    fwd = jax.jit(functools.partial(charcnn_forward, **cfg))

    out = jax.block_until_ready(fwd(char_ids, arrays))

    # Reference on bf16-rounded embedding / conv weights (the kernel stores
    # those in bf16 and accumulates in f32; pooled features and the highway
    # weight stay f32), so the comparison isolates structural correctness.
    ref_params = dict(params)
    ref_params["emb_table"] = _bf16_round(params["emb_table"])
    for k in KERNEL_SIZES:
        ref_params[f"w{k}"] = _bf16_round(params[f"w{k}"])
    ref = charcnn_ref(char_ids, ref_params, KERNEL_SIZES, NUM_KERNELS)

    assert out.shape == (B, HIDDEN), out.shape
    assert jnp.allclose(out, ref, atol=5e-2, rtol=5e-2), "Pallas kernel mismatch vs reference"

    print("KERNEL_OK")
</pallas_src>

<mosaic_0001>
module attributes {stable_mosaic.version = 11 : i64} {
  func.func @_charcnn_kernel(%arg0: i32, %arg1: memref<8x24x32xbf16, #tpu.memory_space<vmem>>, %arg2: memref<4x32x128xbf16, #tpu.memory_space<vmem>>, %arg3: memref<1x128xf32, #tpu.memory_space<vmem>>, %arg4: memref<16x128xf32, #tpu.memory_space<vmem>>, %arg5: memref<128x768xf32, #tpu.memory_space<vmem>>, %arg6: memref<1x768xf32, #tpu.memory_space<vmem>>, %arg7: memref<8x768xf32, #tpu.memory_space<vmem>>, %arg8: memref<8x128xf32, #tpu.memory_space<vmem>>) attributes {dimension_semantics = [#tpu.dimension_semantics<parallel>], iteration_bounds = array<i64: 1>, scalar_prefetch = 0 : i64, scratch_operands = 1 : i64, tpu.core_type = #tpu.core_type<tc>, window_params = [{transform_indices = @transform_0, window_bounds = array<i64: 8, 24, 32>}, {pipeline_mode = #tpu.pipeline_mode<synchronous>, transform_indices = @transform_1, window_bounds = array<i64: 4, 32, 128>}, {pipeline_mode = #tpu.pipeline_mode<synchronous>, transform_indices = @transform_2, window_bounds = array<i64: 1, 128>}, {pipeline_mode = #tpu.pipeline_mode<synchronous>, transform_indices = @transform_3, window_bounds = array<i64: 16, 128>}, {pipeline_mode = #tpu.pipeline_mode<synchronous>, transform_indices = @transform_4, window_bounds = array<i64: 128, 768>}, {pipeline_mode = #tpu.pipeline_mode<synchronous>, transform_indices = @transform_5, window_bounds = array<i64: 1, 768>}, {transform_indices = @transform_6, window_bounds = array<i64: 8, 768>}]} {
    %c0_i32 = arith.constant 0 : i32
    %c1_i32 = arith.constant 1 : i32
    %0 = arith.muli %c0_i32, %c1_i32 : i32
    %c0_i32_0 = arith.constant 0 : i32
    %1 = arith.addi %c0_i32_0, %0 : i32
    %c8_i32 = arith.constant 8 : i32
    %2 = arith.muli %1, %c8_i32 : i32
    %3 = tpu.assume_multiple %2, 8 : i32
    %cst = arith.constant 0.000000e+00 : f32
    %4 = vector.broadcast %cst : f32 to vector<128x128xf32>
    %5 = arith.index_cast %3 : i32 to index
    %c0 = arith.constant 0 : index
    %c0_1 = arith.constant 0 : index
    %6 = vector.load %arg1[%5, %c0, %c0_1] : memref<8x24x32xbf16, #tpu.memory_space<vmem>>, vector<8x16x32xbf16>
    %7 = vector.shape_cast %6 : vector<8x16x32xbf16> to vector<128x32xbf16>
    %c0_2 = arith.constant 0 : index
    %c0_3 = arith.constant 0 : index
    %c0_4 = arith.constant 0 : index
    %8 = vector.load %arg2[%c0_2, %c0_3, %c0_4] : memref<4x32x128xbf16, #tpu.memory_space<vmem>>, vector<1x32x128xbf16>
    %9 = vector.shape_cast %8 : vector<1x32x128xbf16> to vector<32x128xbf16>
    %cst_5 = arith.constant dense<0.000000e+00> : vector<128x128xf32>
    %10 = tpu.matmul %7, %9, %cst_5 {dimension_numbers = #tpu.dot_dimension_numbers<[1], [0], [0], [1], [0, 0, 1, 1], [], []>} : vector<128x32xbf16>, vector<32x128xbf16>, vector<128x128xf32> -> vector<128x128xf32>
    %11 = arith.addf %4, %10 : vector<128x128xf32>
    %12 = arith.index_cast %3 : i32 to index
    %c1 = arith.constant 1 : index
    %c0_6 = arith.constant 0 : index
    %13 = vector.load %arg1[%12, %c1, %c0_6] : memref<8x24x32xbf16, #tpu.memory_space<vmem>>, vector<8x16x32xbf16>
    %14 = vector.shape_cast %13 : vector<8x16x32xbf16> to vector<128x32xbf16>
    %c1_7 = arith.constant 1 : index
    %c0_8 = arith.constant 0 : index
    %c0_9 = arith.constant 0 : index
    %15 = vector.load %arg2[%c1_7, %c0_8, %c0_9] : memref<4x32x128xbf16, #tpu.memory_space<vmem>>, vector<1x32x128xbf16>
    %16 = vector.shape_cast %15 : vector<1x32x128xbf16> to vector<32x128xbf16>
    %cst_10 = arith.constant dense<0.000000e+00> : vector<128x128xf32>
    %17 = tpu.matmul %14, %16, %cst_10 {dimension_numbers = #tpu.dot_dimension_numbers<[1], [0], [0], [1], [0, 0, 1, 1], [], []>} : vector<128x32xbf16>, vector<32x128xbf16>, vector<128x128xf32> -> vector<128x128xf32>
    %18 = arith.addf %11, %17 : vector<128x128xf32>
    %19 = arith.index_cast %3 : i32 to index
    %c2 = arith.constant 2 : index
    %c0_11 = arith.constant 0 : index
    %20 = vector.load %arg1[%19, %c2, %c0_11] : memref<8x24x32xbf16, #tpu.memory_space<vmem>>, vector<8x16x32xbf16>
    %21 = vector.shape_cast %20 : vector<8x16x32xbf16> to vector<128x32xbf16>
    %c2_12 = arith.constant 2 : index
    %c0_13 = arith.constant 0 : index
    %c0_14 = arith.constant 0 : index
    %22 = vector.load %arg2[%c2_12, %c0_13, %c0_14] : memref<4x32x128xbf16, #tpu.memory_space<vmem>>, vector<1x32x128xbf16>
    %23 = vector.shape_cast %22 : vector<1x32x128xbf16> to vector<32x128xbf16>
    %cst_15 = arith.constant dense<0.000000e+00> : vector<128x128xf32>
    %24 = tpu.matmul %21, %23, %cst_15 {dimension_numbers = #tpu.dot_dimension_numbers<[1], [0], [0], [1], [0, 0, 1, 1], [], []>} : vector<128x32xbf16>, vector<32x128xbf16>, vector<128x128xf32> -> vector<128x128xf32>
    %25 = arith.addf %18, %24 : vector<128x128xf32>
    %26 = arith.index_cast %3 : i32 to index
    %c3 = arith.constant 3 : index
    %c0_16 = arith.constant 0 : index
    %27 = vector.load %arg1[%26, %c3, %c0_16] : memref<8x24x32xbf16, #tpu.memory_space<vmem>>, vector<8x16x32xbf16>
    %28 = vector.shape_cast %27 : vector<8x16x32xbf16> to vector<128x32xbf16>
    %c3_17 = arith.constant 3 : index
    %c0_18 = arith.constant 0 : index
    %c0_19 = arith.constant 0 : index
    %29 = vector.load %arg2[%c3_17, %c0_18, %c0_19] : memref<4x32x128xbf16, #tpu.memory_space<vmem>>, vector<1x32x128xbf16>
    %30 = vector.shape_cast %29 : vector<1x32x128xbf16> to vector<32x128xbf16>
    %cst_20 = arith.constant dense<0.000000e+00> : vector<128x128xf32>
    %31 = tpu.matmul %28, %30, %cst_20 {dimension_numbers = #tpu.dot_dimension_numbers<[1], [0], [0], [1], [0, 0, 1, 1], [], []>} : vector<128x32xbf16>, vector<32x128xbf16>, vector<128x128xf32> -> vector<128x128xf32>
    %32 = arith.addf %25, %31 : vector<128x128xf32>
    %c0_21 = arith.constant 0 : index
    %c0_22 = arith.constant 0 : index
    %33 = vector.load %arg3[%c0_21, %c0_22] : memref<1x128xf32, #tpu.memory_space<vmem>>, vector<1x128xf32>
    %34 = vector.broadcast %33 : vector<1x128xf32> to vector<128x128xf32>
    %35 = arith.addf %32, %34 : vector<128x128xf32>
    %cst_23 = arith.constant 0.000000e+00 : f32
    %36 = vector.broadcast %cst_23 : f32 to vector<128x128xf32>
    %37 = arith.maximumf %35, %36 : vector<128x128xf32>
    %38 = vector.shape_cast %37 : vector<128x128xf32> to vector<8x16x128xf32>
    %c0_24 = arith.constant 0 : index
    %c0_25 = arith.constant 0 : index
    %39 = vector.load %arg4[%c0_24, %c0_25] : memref<16x128xf32, #tpu.memory_space<vmem>>, vector<16x128xf32>
    %40 = vector.shape_cast %39 : vector<16x128xf32> to vector<1x16x128xf32>
    %41 = vector.broadcast %40 : vector<1x16x128xf32> to vector<8x16x128xf32>
    %42 = arith.mulf %38, %41 : vector<8x16x128xf32>
    %cst_26 = arith.constant dense<0xFF800000> : vector<8x128xf32>
    %43 = vector.multi_reduction <maximumf>, %42, %cst_26 [1] : vector<8x16x128xf32> to vector<8x128xf32>
    %44 = arith.index_cast %3 : i32 to index
    %c0_27 = arith.constant 0 : index
    %45 = vector.load %arg8[%44, %c0_27] : memref<8x128xf32, #tpu.memory_space<vmem>>, vector<8x128xf32>
    tpu.vector_store %arg8[%44, %c0_27], %43 {strides = array<i32>} : memref<8x128xf32, #tpu.memory_space<vmem>>, vector<8x128xf32>,
    %c1_i32_28 = arith.constant 1 : i32
    %c0_29 = arith.constant 0 : index
    %c0_30 = arith.constant 0 : index
    %46 = vector.load %arg8[%c0_29, %c0_30] : memref<8x128xf32, #tpu.memory_space<vmem>>, vector<8x128xf32>
    %c0_31 = arith.constant 0 : index
    %c0_32 = arith.constant 0 : index
    %47 = vector.load %arg5[%c0_31, %c0_32] : memref<128x768xf32, #tpu.memory_space<vmem>>, vector<128x768xf32>
    %cst_33 = arith.constant dense<0.000000e+00> : vector<8x768xf32>
    %48 = tpu.matmul %46, %47, %cst_33 {dimension_numbers = #tpu.dot_dimension_numbers<[1], [0], [0], [1], [0, 0, 1, 1], [], []>} : vector<8x128xf32>, vector<128x768xf32>, vector<8x768xf32> -> vector<8x768xf32>
    %c0_34 = arith.constant 0 : index
    %c0_35 = arith.constant 0 : index
    %49 = vector.load %arg6[%c0_34, %c0_35] : memref<1x768xf32, #tpu.memory_space<vmem>>, vector<1x768xf32>
    %50 = vector.broadcast %49 : vector<1x768xf32> to vector<8x768xf32>
    %51 = arith.addf %48, %50 : vector<8x768xf32>
    %c0_36 = arith.constant 0 : index
    %c0_37 = arith.constant 0 : index
    %52 = vector.load %arg7[%c0_36, %c0_37] : memref<8x768xf32, #tpu.memory_space<vmem>>, vector<8x768xf32>
    tpu.vector_store %arg7[%c0_36, %c0_37], %51 {strides = array<i32>} : memref<8x768xf32, #tpu.memory_space<vmem>>, vector<8x768xf32>,
    return
  }
  func.func @transform_0(%arg0: i32) -> (i32, i32, i32) {
    %c0_i32 = arith.constant 0 : i32
    %c0_i32_0 = arith.constant 0 : i32
    %c0_i32_1 = arith.constant 0 : i32
    return %arg0, %c0_i32, %c0_i32_0 : i32, i32, i32
  }
  func.func @transform_1(%arg0: i32) -> (i32, i32, i32) {
    %c0_i32 = arith.constant 0 : i32
    %c0_i32_0 = arith.constant 0 : i32
    %c0_i32_1 = arith.constant 0 : i32
    %c0_i32_2 = arith.constant 0 : i32
    return %c0_i32, %c0_i32_0, %c0_i32_1 : i32, i32, i32
  }
  func.func @transform_2(%arg0: i32) -> (i32, i32) {
    %c0_i32 = arith.constant 0 : i32
    %c0_i32_0 = arith.constant 0 : i32
    %c0_i32_1 = arith.constant 0 : i32
    return %c0_i32, %c0_i32_0 : i32, i32
  }
  func.func @transform_3(%arg0: i32) -> (i32, i32) {
    %c0_i32 = arith.constant 0 : i32
    %c0_i32_0 = arith.constant 0 : i32
    %c0_i32_1 = arith.constant 0 : i32
    return %c0_i32, %c0_i32_0 : i32, i32
  }
  func.func @transform_4(%arg0: i32) -> (i32, i32) {
    %c0_i32 = arith.constant 0 : i32
    %c0_i32_0 = arith.constant 0 : i32
    %c0_i32_1 = arith.constant 0 : i32
    return %c0_i32, %c0_i32_0 : i32, i32
  }
  func.func @transform_5(%arg0: i32) -> (i32, i32) {
    %c0_i32 = arith.constant 0 : i32
    %c0_i32_0 = arith.constant 0 : i32
    %c0_i32_1 = arith.constant 0 : i32
    return %c0_i32, %c0_i32_0 : i32, i32
  }
  func.func @transform_6(%arg0: i32) -> (i32, i32) {
    %c0_i32 = arith.constant 0 : i32
    %c0_i32_0 = arith.constant 0 : i32
    return %arg0, %c0_i32 : i32, i32
  }
}

</mosaic_0001>

<llo_original>
// kernel: charcnn_forward.1
$region0: #{charcnn_forward.1}
  #allocation0 [shape = 'u32[]', space=smem, size = 0x4, offset = 0x4, fixed_abs, tag = 'smem constant byte address 0x4 - core index']
  #allocation1 [shape = 'u32[144,128]{1,0:T(1,128)}', space=vmem, size = 0x12000, scoped, tag = 'internal scratch']
  #allocation2 [shape = 'f32[8,128]{1,0:T(8,128)}', space=vmem, size = 0x1000, scoped, tag = 'scratch operand']
  %s0 = inlined_call_operand.vmem [shape: bf16[8,24,32], index: 0, kind: input, shape index: {}]
  %s1 = inlined_call_operand.vmem [shape: bf16[4,32,128], index: 1, kind: input, shape index: {}]
  %s2 = inlined_call_operand.vmem [shape: f32[1,128], index: 2, kind: input, shape index: {}]
  %s3 = inlined_call_operand.vmem [shape: f32[16,128], index: 3, kind: input, shape index: {}]
  %s4 = inlined_call_operand.vmem [shape: f32[128,768], index: 4, kind: input, shape index: {}]
  %s5 = inlined_call_operand.vmem [shape: f32[1,768], index: 5, kind: input, shape index: {}]
  %s6 = inlined_call_operand.vmem [shape: f32[8,768], index: 6, kind: output, shape index: {}]
  %s7 = sld [smem:[#allocation0]]
  $region34: #{charcnn_forward.1} parent=0
    _
  %s9 = ssub.s32 1, %s7
  %s10 = scalar_select 0, %s9, %s7
  // Predicated region
  $region2: #{charcnn_forward.1} parent=0 // pred_check
    _
  $region3: #{charcnn_forward.1} parent=0 // pred_check_branch
    %12 = sbr.rel (0) target = $region5
  $region4: #{charcnn_forward.1} parent=0 // pred_region
    _
  $region5: #{charcnn_forward.1} parent=0 // pred_fallthru
    _
  // Predicated region
  $region6: #{charcnn_forward.1} parent=0 // pred_check
    _
  $region7: #{charcnn_forward.1} parent=0 // pred_check_branch
    %14 = sbr.rel (0) target = $region9
  $region8: #{charcnn_forward.1} parent=0 // pred_region
    _
  $region9: #{charcnn_forward.1} parent=0 // pred_fallthru
    _
  // Predicated region
  $region10: #{charcnn_forward.1} parent=0 // pred_check
    _
  $region11: #{charcnn_forward.1} parent=0 // pred_check_branch
    %16 = sbr.rel (0) target = $region13
  $region12: #{charcnn_forward.1} parent=0 // pred_region
    _
  $region13: #{charcnn_forward.1} parent=0 // pred_fallthru
    _
  // Predicated region
  $region14: #{charcnn_forward.1} parent=0 // pred_check
    _
  $region15: #{charcnn_forward.1} parent=0 // pred_check_branch
    %18 = sbr.rel (0) target = $region17
  $region16: #{charcnn_forward.1} parent=0 // pred_region
    _
  $region17: #{charcnn_forward.1} parent=0 // pred_fallthru
    _
  // Predicated region
  $region18: #{charcnn_forward.1} parent=0 // pred_check
    _
  $region19: #{charcnn_forward.1} parent=0 // pred_check_branch
    %20 = sbr.rel (0) target = $region21
  $region20: #{charcnn_forward.1} parent=0 // pred_region
    _
  $region21: #{charcnn_forward.1} parent=0 // pred_fallthru
    _
  // Predicated region
  $region22: #{charcnn_forward.1} parent=0 // pred_check
    _
  $region23: #{charcnn_forward.1} parent=0 // pred_check_branch
    %22 = sbr.rel (0) target = $region25
  $region24: #{charcnn_forward.1} parent=0 // pred_region
    _
  $region25: #{charcnn_forward.1} parent=0 // pred_fallthru
    _
  %s24 = smul.u32 0, 3
  %s25 = smul.addr %s24, 4
  %s26 = scalar_lea.vmem %s0, %s25
  %v27 = vld [vmem:[%s26] sm:$0xf]
  %v28 = vld [vmem:[%s26 + $0x4] sm:$0xf]
  %v29 = vld [vmem:[%s26 + $0xc] sm:$0xf]
  %v30 = vld [vmem:[%s26 + $0x10] sm:$0xf]
  %v31 = vld [vmem:[%s26 + $0x18] sm:$0xf]
  %v32 = vld [vmem:[%s26 + $0x1c] sm:$0xf]
  %v33 = vld [vmem:[%s26 + $0x24] sm:$0xf]
  %v34 = vld [vmem:[%s26 + $0x28] sm:$0xf]
  %v35 = vld [vmem:[%s26 + $0x30] sm:$0xf]
  %v36 = vld [vmem:[%s26 + $0x34] sm:$0xf]
  %v37 = vld [vmem:[%s26 + $0x3c] sm:$0xf]
  %v38 = vld [vmem:[%s26 + $0x40] sm:$0xf]
  %v39 = vld [vmem:[%s26 + $0x48] sm:$0xf]
  %v40 = vld [vmem:[%s26 + $0x4c] sm:$0xf]
  %v41 = vld [vmem:[%s26 + $0x54] sm:$0xf]
  %v42 = vld [vmem:[%s26 + $0x58] sm:$0xf]
  %v43 = vld [vmem:[%s1] sm:$0xf]
  %v44 = vld [vmem:[%s1 + $0x4] sm:$0xf]
  %v45 = vld [vmem:[%s1 + $0x8] sm:$0xf]
  %v46 = vld [vmem:[%s1 + $0xc] sm:$0xf]
  %v47 = vld [vmem:[%s26 + $0x8] sm:$0x1]
  %v48 = vld [vmem:[%s26 + $0x14] sm:$0x1]
  %v49 = vld [vmem:[%s26 + $0x20] sm:$0x1]
  %v50 = vld [vmem:[%s26 + $0x2c] sm:$0x1]
  %v51 = vld [vmem:[%s26 + $0x38] sm:$0x1]
  %v52 = vld [vmem:[%s26 + $0x44] sm:$0x1]
  %v53 = vld [vmem:[%s26 + $0x50] sm:$0x1]
  %v54 = vld [vmem:[%s26 + $0x5c] sm:$0x1]
  %vm55 = vsmask.f32 3328
  %vm56 = vsmask.f32 7440
  %vm57 = vmor %vm55, %vm56
  %v59 = vshrl.u32 %v27, 16
  %v61 = vrot.slane %v59, 4
  %v62 = vshll.u32 %v27, 16
  %v64 = vrot.slane %v62, 5
  %v65 = vor.u32 %v61, %v64
  %v66 = vrot.slane %v65, 4
  %v68 = vshll.u32 %v28, 16
  %v70 = vrot.slane %v68, 5
  %v71 = vsel %vm57, %v66, %v70
  %v72 = vshrl.u32 %v28, 16
  %v74 = vrot.slane %v72, 4
  %v75 = vor.u32 %v74, %v70
  %v76 = vrot.slane %v75, 4
  %v78 = vshll.u32 %v47, 16
  %v80 = vrot.slane %v78, 5
  %v81 = vsel %vm57, %v76, %v80
  %v83 = vshrl.u32 %v29, 16
  %v85 = vrot.slane %v83, 4
  %v86 = vshll.u32 %v29, 16
  %v88 = vrot.slane %v86, 5
  %v89 = vor.u32 %v85, %v88
  %v90 = vrot.slane %v89, 4
  %v92 = vshll.u32 %v30, 16
  %v94 = vrot.slane %v92, 5
  %v95 = vsel %vm57, %v90, %v94
  %v96 = vshrl.u32 %v30, 16
  %v98 = vrot.slane %v96, 4
  %v99 = vor.u32 %v98, %v94
  %v100 = vrot.slane %v99, 4
  %v102 = vshll.u32 %v48, 16
  %v104 = vrot.slane %v102, 5
  %v105 = vsel %vm57, %v100, %v104
  %v107 = vshrl.u32 %v31, 16
  %v109 = vrot.slane %v107, 4
  %v110 = vshll.u32 %v31, 16
  %v112 = vrot.slane %v110, 5
  %v113 = vor.u32 %v109, %v112
  %v114 = vrot.slane %v113, 4
  %v116 = vshll.u32 %v32, 16
  %v118 = vrot.slane %v116, 5
  %v119 = vsel %vm57, %v114, %v118
  %v120 = vshrl.u32 %v32, 16
  %v122 = vrot.slane %v120, 4
  %v123 = vor.u32 %v122, %v118
  %v124 = vrot.slane %v123, 4
  %v126 = vshll.u32 %v49, 16
  %v128 = vrot.slane %v126, 5
  %v129 = vsel %vm57, %v124, %v128
  %v131 = vshrl.u32 %v33, 16
  %v133 = vrot.slane %v131, 4
  %v134 = vshll.u32 %v33, 16
  %v136 = vrot.slane %v134, 5
  %v137 = vor.u32 %v133, %v136
  %v138 = vrot.slane %v137, 4
  %v140 = vshll.u32 %v34, 16
  %v142 = vrot.slane %v140, 5
  %v143 = vsel %vm57, %v138, %v142
  %v144 = vshrl.u32 %v34, 16
  %v146 = vrot.slane %v144, 4
  %v147 = vor.u32 %v146, %v142
  %v148 = vrot.slane %v147, 4
  %v150 = vshll.u32 %v50, 16
  %v152 = vrot.slane %v150, 5
  %v153 = vsel %vm57, %v148, %v152
  %v155 = vshrl.u32 %v35, 16
  %v157 = vrot.slane %v155, 4
  %v158 = vshll.u32 %v35, 16
  %v160 = vrot.slane %v158, 5
  %v161 = vor.u32 %v157, %v160
  %v162 = vrot.slane %v161, 4
  %v164 = vshll.u32 %v36, 16
  %v166 = vrot.slane %v164, 5
  %v167 = vsel %vm57, %v162, %v166
  %v168 = vshrl.u32 %v36, 16
  %v170 = vrot.slane %v168, 4
  %v171 = vor.u32 %v170, %v166
  %v172 = vrot.slane %v171, 4
  %v174 = vshll.u32 %v51, 16
  %v176 = vrot.slane %v174, 5
  %v177 = vsel %vm57, %v172, %v176
  %v179 = vshrl.u32 %v37, 16
  %v181 = vrot.slane %v179, 4
  %v182 = vshll.u32 %v37, 16
  %v184 = vrot.slane %v182, 5
  %v185 = vor.u32 %v181, %v184
  %v186 = vrot.slane %v185, 4
  %v188 = vshll.u32 %v38, 16
  %v190 = vrot.slane %v188, 5
  %v191 = vsel %vm57, %v186, %v190
  %v192 = vshrl.u32 %v38, 16
  %v194 = vrot.slane %v192, 4
  %v195 = vor.u32 %v194, %v190
  %v196 = vrot.slane %v195, 4
  %v198 = vshll.u32 %v52, 16
  %v200 = vrot.slane %v198, 5
  %v201 = vsel %vm57, %v196, %v200
  %v203 = vshrl.u32 %v39, 16
  %v205 = vrot.slane %v203, 4
  %v206 = vshll.u32 %v39, 16
  %v208 = vrot.slane %v206, 5
  %v209 = vor.u32 %v205, %v208
  %v210 = vrot.slane %v209, 4
  %v212 = vshll.u32 %v40, 16
  %v214 = vrot.slane %v212, 5
  %v215 = vsel %vm57, %v210, %v214
  %v216 = vshrl.u32 %v40, 16
  %v218 = vrot.slane %v216, 4
  %v219 = vor.u32 %v218, %v214
  %v220 = vrot.slane %v219, 4
  %v222 = vshll.u32 %v53, 16
  %v224 = vrot.slane %v222, 5
  %v225 = vsel %vm57, %v220, %v224
  %v227 = vshrl.u32 %v41, 16
  %v229 = vrot.slane %v227, 4
  %v230 = vshll.u32 %v41, 16
  %v232 = vrot.slane %v230, 5
  %v233 = vor.u32 %v229, %v232
  %v234 = vrot.slane %v233, 4
  %v236 = vshll.u32 %v42, 16
  %v238 = vrot.slane %v236, 5
  %v239 = vsel %vm57, %v234, %v238
  %v240 = vshrl.u32 %v42, 16
  %v242 = vrot.slane %v240, 4
  %v243 = vor.u32 %v242, %v238
  %v244 = vrot.slane %v243, 4
  %v246 = vshll.u32 %v54, 16
  %v248 = vrot.slane %v246, 5
  %v249 = vsel %vm57, %v244, %v248
  %s250 = scalar_lea.vmem %s1, 16
  %v251 = vld [vmem:[%s250] sm:$0xf]
  %v252 = vld [vmem:[%s250 + $0x4] sm:$0xf]
  %v253 = vld [vmem:[%s250 + $0x8] sm:$0xf]
  %v254 = vld [vmem:[%s250 + $0xc] sm:$0xf]
  %v255 = vunpack.c.l.b16 %v71
  %v256 = vunpack.c.l.b16 %v81
  %v257 = vunpack.c.l.b16 %v95
  %v258 = vunpack.c.l.b16 %v105
  %v259 = vunpack.c.l.b16 %v119
  %v260 = vunpack.c.l.b16 %v129
  %v261 = vunpack.c.l.b16 %v143
  %v262 = vunpack.c.l.b16 %v153
  %v263 = vunpack.c.l.b16 %v167
  %v264 = vunpack.c.l.b16 %v177
  %v265 = vunpack.c.l.b16 %v191
  %v266 = vunpack.c.l.b16 %v201
  %v267 = vunpack.c.l.b16 %v215
  %v268 = vunpack.c.l.b16 %v225
  %v269 = vunpack.c.l.b16 %v239
  %v270 = vunpack.c.l.b16 %v249
  %v271 = vpack.c.b16 %v256, %v255
  %v272 = vpack.c.b16 %v258, %v257
  %v273 = vpack.c.b16 %v260, %v259
  %v274 = vpack.c.b16 %v262, %v261
  %v275 = vpack.c.b16 %v264, %v263
  %v276 = vpack.c.b16 %v266, %v265
  %v277 = vpack.c.b16 %v268, %v267
  %v278 = vpack.c.b16 %v270, %v269
  %v283 = vunpack.c.l.b16 %v251
  %v284 = vunpack.c.l.b16 %v252
  %v285 = vunpack.c.l.b16 %v253
  %v286 = vunpack.c.l.b16 %v254
  %v287 = vpack.c.b16 %v284, %v283
  %v288 = vpack.c.b16 %v286, %v285
  %vm291 = vcmask 261120
  %v293 = vsel %vm291, %v271, 0
  %v296 = vsel %vm291, %v272, 0
  %v299 = vsel %vm291, %v273, 0
  %v302 = vsel %vm291, %v274, 0
  %v305 = vsel %vm291, %v275, 0
  %v308 = vsel %vm291, %v276, 0
  %v311 = vsel %vm291, %v277, 0
  %v314 = vsel %vm291, %v278, 0
  %316 = vmatprep.subr.bf16.mxu0 0
  %317 = vmatpush1.bf16.msra.mxu0 %v287
  %318 = vmatprep.subr.bf16.mxu0 0
  %319 = vmatpush1.bf16.msra.mxu0 %v288
  %320 = vmatprep.subr.bf16.mxu0 0
  %321 = vmatpush1.bf16.msra.mxu0 0
  %322 = vmatprep.subr.bf16.mxu0 0
  %323 = vmatpush1.bf16.msra.mxu0 0
  %324 = vmatprep.subr.bf16.mxu0 0
  %325 = vmatpush1.bf16.msra.mxu0 0
  %326 = vmatprep.subr.bf16.mxu0 0
  %327 = vmatpush1.bf16.msra.mxu0 0
  %328 = vmatprep.subr.bf16.mxu0 0
  %329 = vmatpush1.bf16.msra.mxu0 0
  %330 = vmatprep.subr.bf16.mxu0 0
  %331 = vmatpush1.bf16.msra.mxu0 0
  %332 = vmatprep.subr.bf16.mxu0 0
  %333 = vmatpush1.bf16.msra.mxu0 0
  %334 = vmatprep.subr.bf16.mxu0 0
  %335 = vmatpush1.bf16.msra.mxu0 0
  %336 = vmatprep.subr.bf16.mxu0 0
  %337 = vmatpush1.bf16.msra.mxu0 0
  %338 = vmatprep.subr.bf16.mxu0 0
  %339 = vmatpush1.bf16.msra.mxu0 0
  %340 = vmatprep.subr.bf16.mxu0 0
  %341 = vmatpush1.bf16.msra.mxu0 0
  %342 = vmatprep.subr.bf16.mxu0 0
  %343 = vmatpush1.bf16.msra.mxu0 0
  %344 = vmatprep.subr.bf16.mxu0 0
  %345 = vmatpush1.bf16.msra.mxu0 0
  %346 = vmatprep.subr.bf16.mxu0 0
  %347 = vmatpush1.bf16.msra.mxu0 0
  %348 = vmatprep.mubr.bf16.mxu0 0
  %349 = vmatmul.mubr.bf16.gmra.mrb[0].mxu0 %v293
  %v350 = vpop.f32.mrb[0].mxu0
  %v351 = vadd.f32 0.0, %v350
  %v352 = vpop.f32.mrb[0].mxu0
  %v353 = vpop.f32.mrb[0].mxu0
  %v354 = vadd.f32 0.0, %v353
  %v355 = vpop.f32.mrb[0].mxu0
  %356 = vmatprep.mubr.bf16.mxu0 0
  %357 = vmatmul.mubr.bf16.gmra.mrb[0].mxu0 %v296
  %v358 = vpop.f32.mrb[0].mxu0
  %v359 = vadd.f32 0.0, %v358
  %v360 = vpop.f32.mrb[0].mxu0
  %v361 = vpop.f32.mrb[0].mxu0
  %v362 = vadd.f32 0.0, %v361
  %v363 = vpop.f32.mrb[0].mxu0
  %364 = vmatprep.mubr.bf16.mxu0 0
  %365 = vmatmul.mubr.bf16.gmra.mrb[0].mxu0 %v299
  %v366 = vpop.f32.mrb[0].mxu0
  %v367 = vadd.f32 0.0, %v366
  %v368 = vpop.f32.mrb[0].mxu0
  %v369 = vpop.f32.mrb[0].mxu0
  %v370 = vadd.f32 0.0, %v369
  %v371 = vpop.f32.mrb[0].mxu0
  %372 = vmatprep.mubr.bf16.mxu0 0
  %373 = vmatmul.mubr.bf16.gmra.mrb[0].mxu0 %v302
  %v374 = vpop.f32.mrb[0].mxu0
  %v375 = vadd.f32 0.0, %v374
  %v376 = vpop.f32.mrb[0].mxu0
  %v377 = vpop.f32.mrb[0].mxu0
  %v378 = vadd.f32 0.0, %v377
  %v379 = vpop.f32.mrb[0].mxu0
  %380 = vmatprep.mubr.bf16.mxu0 0
  %381 = vmatmul.mubr.bf16.gmra.mrb[0].mxu0 %v305
  %v382 = vpop.f32.mrb[0].mxu0
  %v383 = vadd.f32 0.0, %v382
  %v384 = vpop.f32.mrb[0].mxu0
  %v385 = vpop.f32.mrb[0].mxu0
  %v386 = vadd.f32 0.0, %v385
  %v387 = vpop.f32.mrb[0].mxu0
  %388 = vmatprep.mubr.bf16.mxu0 0
  %389 = vmatmul.mubr.bf16.gmra.mrb[0].mxu0 %v308
  %v390 = vpop.f32.mrb[0].mxu0
  %v391 = vadd.f32 0.0, %v390
  %v392 = vpop.f32.mrb[0].mxu0
  %v393 = vpop.f32.mrb[0].mxu0
  %v394 = vadd.f32 0.0, %v393
  %v395 = vpop.f32.mrb[0].mxu0
  %396 = vmatprep.mubr.bf16.mxu0 0
  %397 = vmatmul.mubr.bf16.gmra.mrb[0].mxu0 %v311
  %v398 = vpop.f32.mrb[0].mxu0
  %v399 = vadd.f32 0.0, %v398
  %v400 = vpop.f32.mrb[0].mxu0
  %v401 = vpop.f32.mrb[0].mxu0
  %v402 = vadd.f32 0.0, %v401
  %v403 = vpop.f32.mrb[0].mxu0
  %404 = vmatprep.mubr.bf16.mxu0 0
  %405 = vmatmul.mubr.bf16.gmra.mrb[0].mxu0 %v314
  %v406 = vpop.f32.mrb[0].mxu0
  %v407 = vadd.f32 0.0, %v406
  %v408 = vpop.f32.mrb[0].mxu0
  %v409 = vpop.f32.mrb[0].mxu0
  %v410 = vadd.f32 0.0, %v409
  %v411 = vpop.f32.mrb[0].mxu0
  %412 = vdwg.mxu0
  %v429 = vunpack.c.l.b16 %v27
  %v430 = vunpack.c.l.b16 %v28
  %v431 = vunpack.c.l.b16 %v29
  %v432 = vunpack.c.l.b16 %v30
  %v433 = vunpack.c.l.b16 %v31
  %v434 = vunpack.c.l.b16 %v32
  %v435 = vunpack.c.l.b16 %v33
  %v436 = vunpack.c.l.b16 %v34
  %v437 = vunpack.c.l.b16 %v35
  %v438 = vunpack.c.l.b16 %v36
  %v439 = vunpack.c.l.b16 %v37
  %v440 = vunpack.c.l.b16 %v38
  %v441 = vunpack.c.l.b16 %v39
  %v442 = vunpack.c.l.b16 %v40
  %v443 = vunpack.c.l.b16 %v41
  %v444 = vunpack.c.l.b16 %v42
  %v445 = vpack.c.b16 %v430, %v429
  %v446 = vpack.c.b16 %v432, %v431
  %v447 = vpack.c.b16 %v434, %v433
  %v448 = vpack.c.b16 %v436, %v435
  %v449 = vpack.c.b16 %v438, %v437
  %v450 = vpack.c.b16 %v440, %v439
  %v451 = vpack.c.b16 %v442, %v441
  %v452 = vpack.c.b16 %v444, %v443
  %v457 = vunpack.c.l.b16 %v43
  %v458 = vunpack.c.l.b16 %v44
  %v459 = vunpack.c.l.b16 %v45
  %v460 = vunpack.c.l.b16 %v46
  %v461 = vpack.c.b16 %v458, %v457
  %v462 = vpack.c.b16 %v460, %v459
  %v466 = vsel %vm291, %v445, 0
  %v469 = vsel %vm291, %v446, 0
  %v472 = vsel %vm291, %v447, 0
  %v475 = vsel %vm291, %v448, 0
  %v478 = vsel %vm291, %v449, 0
  %v481 = vsel %vm291, %v450, 0
  %v484 = vsel %vm291, %v451, 0
  %v487 = vsel %vm291, %v452, 0
  %489 = vmatprep.subr.bf16.mxu0 0
  %490 = vmatpush1.bf16.msra.mxu0 %v461
  %491 = vmatprep.subr.bf16.mxu0 0
  %492 = vmatpush1.bf16.msra.mxu0 %v462
  %493 = vmatprep.subr.bf16.mxu0 0
  %494 = vmatpush1.bf16.msra.mxu0 0
  %495 = vmatprep.subr.bf16.mxu0 0
  %496 = vmatpush1.bf16.msra.mxu0 0
  %497 = vmatprep.subr.bf16.mxu0 0
  %498 = vmatpush1.bf16.msra.mxu0 0
  %499 = vmatprep.subr.bf16.mxu0 0
  %500 = vmatpush1.bf16.msra.mxu0 0
  %501 = vmatprep.subr.bf16.mxu0 0
  %502 = vmatpush1.bf16.msra.mxu0 0
  %503 = vmatprep.subr.bf16.mxu0 0
  %504 = vmatpush1.bf16.msra.mxu0 0
  %505 = vmatprep.subr.bf16.mxu0 0
  %506 = vmatpush1.bf16.msra.mxu0 0
  %507 = vmatprep.subr.bf16.mxu0 0
  %508 = vmatpush1.bf16.msra.mxu0 0
  %509 = vmatprep.subr.bf16.mxu0 0
  %510 = vmatpush1.bf16.msra.mxu0 0
  %511 = vmatprep.subr.bf16.mxu0 0
  %512 = vmatpush1.bf16.msra.mxu0 0
  %513 = vmatprep.subr.bf16.mxu0 0
  %514 = vmatpush1.bf16.msra.mxu0 0
  %515 = vmatprep.subr.bf16.mxu0 0
  %516 = vmatpush1.bf16.msra.mxu0 0
  %517 = vmatprep.subr.bf16.mxu0 0
  %518 = vmatpush1.bf16.msra.mxu0 0
  %519 = vmatprep.subr.bf16.mxu0 0
  %520 = vmatpush1.bf16.msra.mxu0 0
  %521 = vmatprep.mubr.bf16.mxu0 0
  %522 = vmatmul.mubr.bf16.gmra.mrb[0].mxu0 %v466
  %v523 = vpop.f32.mrb[0].mxu0
  %v524 = vadd.f32 %v351, %v523
  %v525 = vpop.f32.mrb[0].mxu0
  %v526 = vpop.f32.mrb[0].mxu0
  %v527 = vadd.f32 %v354, %v526
  %v528 = vpop.f32.mrb[0].mxu0
  %529 = vmatprep.mubr.bf16.mxu0 0
  %530 = vmatmul.mubr.bf16.gmra.mrb[0].mxu0 %v469
  %v531 = vpop.f32.mrb[0].mxu0
  %v532 = vadd.f32 %v359, %v531
  %v533 = vpop.f32.mrb[0].mxu0
  %v534 = vpop.f32.mrb[0].mxu0
  %v535 = vadd.f32 %v362, %v534
  %v536 = vpop.f32.mrb[0].mxu0
  %537 = vmatprep.mubr.bf16.mxu0 0
  %538 = vmatmul.mubr.bf16.gmra.mrb[0].mxu0 %v472
  %v539 = vpop.f32.mrb[0].mxu0
  %v540 = vadd.f32 %v367, %v539
  %v541 = vpop.f32.mrb[0].mxu0
  %v542 = vpop.f32.mrb[0].mxu0
  %v543 = vadd.f32 %v370, %v542
  %v544 = vpop.f32.mrb[0].mxu0
  %545 = vmatprep.mubr.bf16.mxu0 0
  %546 = vmatmul.mubr.bf16.gmra.mrb[0].mxu0 %v475
  %v547 = vpop.f32.mrb[0].mxu0
  %v548 = vadd.f32 %v375, %v547
  %v549 = vpop.f32.mrb[0].mxu0
  %v550 = vpop.f32.mrb[0].mxu0
  %v551 = vadd.f32 %v378, %v550
  %v552 = vpop.f32.mrb[0].mxu0
  %553 = vmatprep.mubr.bf16.mxu0 0
  %554 = vmatmul.mubr.bf16.gmra.mrb[0].mxu0 %v478
  %v555 = vpop.f32.mrb[0].mxu0
  %v556 = vadd.f32 %v383, %v555
  %v557 = vpop.f32.mrb[0].mxu0
  %v558 = vpop.f32.mrb[0].mxu0
  %v559 = vadd.f32 %v386, %v558
  %v560 = vpop.f32.mrb[0].mxu0
  %561 = vmatprep.mubr.bf16.mxu0 0
  %562 = vmatmul.mubr.bf16.gmra.mrb[0].mxu0 %v481
  %v563 = vpop.f32.mrb[0].mxu0
  %v564 = vadd.f32 %v391, %v563
  %v565 = vpop.f32.mrb[0].mxu0
  %v566 = vpop.f32.mrb[0].mxu0
  %v567 = vadd.f32 %v394, %v566
  %v568 = vpop.f32.mrb[0].mxu0
  %569 = vmatprep.mubr.bf16.mxu0 0
  %570 = vmatmul.mubr.bf16.gmra.mrb[0].mxu0 %v484
  %v571 = vpop.f32.mrb[0].mxu0
  %v572 = vadd.f32 %v399, %v571
  %v573 = vpop.f32.mrb[0].mxu0
  %v574 = vpop.f32.mrb[0].mxu0
  %v575 = vadd.f32 %v402, %v574
  %v576 = vpop.f32.mrb[0].mxu0
  %577 = vmatprep.mubr.bf16.mxu0 0
  %578 = vmatmul.mubr.bf16.gmra.mrb[0].mxu0 %v487
  %v579 = vpop.f32.mrb[0].mxu0
  %v580 = vadd.f32 %v407, %v579
  %v581 = vpop.f32.mrb[0].mxu0
  %v582 = vpop.f32.mrb[0].mxu0
  %v583 = vadd.f32 %v410, %v582
  %v584 = vpop.f32.mrb[0].mxu0
  %585 = vdwg.mxu0
  %v586 = vld [vmem:[%s26] sm:$0xe]
  %v587 = vld [vmem:[%s26 + $0xc] sm:$0xe]
  %v588 = vld [vmem:[%s26 + $0x18] sm:$0xe]
  %v589 = vld [vmem:[%s26 + $0x24] sm:$0xe]
  %v590 = vld [vmem:[%s26 + $0x30] sm:$0xe]
  %v591 = vld [vmem:[%s26 + $0x3c] sm:$0xe]
  %v592 = vld [vmem:[%s26 + $0x48] sm:$0xe]
  %v593 = vld [vmem:[%s26 + $0x54] sm:$0xe]
  %vm610 = vcmask 1042432
  %vm611 = vcmask 1046532
  %vm612 = vmor %vm610, %vm611
  %v613 = vrot.slane %v586, 5
  %v614 = vrot.slane %v613, 4
  %v615 = vrot.slane %v28, 5
  %v616 = vsel %vm612, %v614, %v615
  %v617 = vrot.slane %v615, 4
  %v618 = vrot.slane %v47, 5
  %v619 = vsel %vm612, %v617, %v618
  %v620 = vrot.slane %v587, 5
  %v621 = vrot.slane %v620, 4
  %v622 = vrot.slane %v30, 5
  %v623 = vsel %vm612, %v621, %v622
  %v624 = vrot.slane %v622, 4
  %v625 = vrot.slane %v48, 5
  %v626 = vsel %vm612, %v624, %v625
  %v627 = vrot.slane %v588, 5
  %v628 = vrot.slane %v627, 4
  %v629 = vrot.slane %v32, 5
  %v630 = vsel %vm612, %v628, %v629
  %v631 = vrot.slane %v629, 4
  %v632 = vrot.slane %v49, 5
  %v633 = vsel %vm612, %v631, %v632
  %v634 = vrot.slane %v589, 5
  %v635 = vrot.slane %v634, 4
  %v636 = vrot.slane %v34, 5
  %v637 = vsel %vm612, %v635, %v636
  %v638 = vrot.slane %v636, 4
  %v639 = vrot.slane %v50, 5
  %v640 = vsel %vm612, %v638, %v639
  %v641 = vrot.slane %v590, 5
  %v642 = vrot.slane %v641, 4
  %v643 = vrot.slane %v36, 5
  %v644 = vsel %vm612, %v642, %v643
  %v645 = vrot.slane %v643, 4
  %v646 = vrot.slane %v51, 5
  %v647 = vsel %vm612, %v645, %v646
  %v648 = vrot.slane %v591, 5
  %v649 = vrot.slane %v648, 4
  %v650 = vrot.slane %v38, 5
  %v651 = vsel %vm612, %v649, %v650
  %v652 = vrot.slane %v650, 4
  %v653 = vrot.slane %v52, 5
  %v654 = vsel %vm612, %v652, %v653
  %v655 = vrot.slane %v592, 5
  %v656 = vrot.slane %v655, 4
  %v657 = vrot.slane %v40, 5
  %v658 = vsel %vm612, %v656, %v657
  %v659 = vrot.slane %v657, 4
  %v660 = vrot.slane %v53, 5
  %v661 = vsel %vm612, %v659, %v660
  %v662 = vrot.slane %v593, 5
  %v663 = vrot.slane %v662, 4
  %v664 = vrot.slane %v42, 5
  %v665 = vsel %vm612, %v663, %v664
  %v666 = vrot.slane %v664, 4
  %v667 = vrot.slane %v54, 5
  %v668 = vsel %vm612, %v666, %v667
  %s669 = scalar_lea.vmem %s1, 32
  %v670 = vld [vmem:[%s669] sm:$0xf]
  %v671 = vld [vmem:[%s669 + $0x4] sm:$0xf]
  %v672 = vld [vmem:[%s669 + $0x8] sm:$0xf]
  %v673 = vld [vmem:[%s669 + $0xc] sm:$0xf]
  %v674 = vunpack.c.l.b16 %v616
  %v675 = vunpack.c.l.b16 %v619
  %v676 = vunpack.c.l.b16 %v623
  %v677 = vunpack.c.l.b16 %v626
  %v678 = vunpack.c.l.b16 %v630
  %v679 = vunpack.c.l.b16 %v633
  %v680 = vunpack.c.l.b16 %v637
  %v681 = vunpack.c.l.b16 %v640
  %v682 = vunpack.c.l.b16 %v644
  %v683 = vunpack.c.l.b16 %v647
  %v684 = vunpack.c.l.b16 %v651
  %v685 = vunpack.c.l.b16 %v654
  %v686 = vunpack.c.l.b16 %v658
  %v687 = vunpack.c.l.b16 %v661
  %v688 = vunpack.c.l.b16 %v665
  %v689 = vunpack.c.l.b16 %v668
  %v690 = vpack.c.b16 %v675, %v674
  %v691 = vpack.c.b16 %v677, %v676
  %v692 = vpack.c.b16 %v679, %v678
  %v693 = vpack.c.b16 %v681, %v680
  %v694 = vpack.c.b16 %v683, %v682
  %v695 = vpack.c.b16 %v685, %v684
  %v696 = vpack.c.b16 %v687, %v686
  %v697 = vpack.c.b16 %v689, %v688
  %v702 = vunpack.c.l.b16 %v670
  %v703 = vunpack.c.l.b16 %v671
  %v704 = vunpack.c.l.b16 %v672
  %v705 = vunpack.c.l.b16 %v673
  %v706 = vpack.c.b16 %v703, %v702
  %v707 = vpack.c.b16 %v705, %v704
  %v711 = vsel %vm291, %v690, 0
  %v714 = vsel %vm291, %v691, 0
  %v717 = vsel %vm291, %v692, 0
  %v720 = vsel %vm291, %v693, 0
  %v723 = vsel %vm291, %v694, 0
  %v726 = vsel %vm291, %v695, 0
  %v729 = vsel %vm291, %v696, 0
  %v732 = vsel %vm291, %v697, 0
  %734 = vmatprep.subr.bf16.mxu0 0
  %735 = vmatpush1.bf16.msra.mxu0 %v706
  %736 = vmatprep.subr.bf16.mxu0 0
  %737 = vmatpush1.bf16.msra.mxu0 %v707
  %738 = vmatprep.subr.bf16.mxu0 0
  %739 = vmatpush1.bf16.msra.mxu0 0
  %740 = vmatprep.subr.bf16.mxu0 0
  %741 = vmatpush1.bf16.msra.mxu0 0
  %742 = vmatprep.subr.bf16.mxu0 0
  %743 = vmatpush1.bf16.msra.mxu0 0
  %744 = vmatprep.subr.bf16.mxu0 0
  %745 = vmatpush1.bf16.msra.mxu0 0
  %746 = vmatprep.subr.bf16.mxu0 0
  %747 = vmatpush1.bf16.msra.mxu0 0
  %748 = vmatprep.subr.bf16.mxu0 0
  %749 = vmatpush1.bf16.msra.mxu0 0
  %750 = vmatprep.subr.bf16.mxu0 0
  %751 = vmatpush1.bf16.msra.mxu0 0
  %752 = vmatprep.subr.bf16.mxu0 0
  %753 = vmatpush1.bf16.msra.mxu0 0
  %754 = vmatprep.subr.bf16.mxu0 0
  %755 = vmatpush1.bf16.msra.mxu0 0
  %756 = vmatprep.subr.bf16.mxu0 0
  %757 = vmatpush1.bf16.msra.mxu0 0
  %758 = vmatprep.subr.bf16.mxu0 0
  %759 = vmatpush1.bf16.msra.mxu0 0
  %760 = vmatprep.subr.bf16.mxu0 0
  %761 = vmatpush1.bf16.msra.mxu0 0
  %762 = vmatprep.subr.bf16.mxu0 0
  %763 = vmatpush1.bf16.msra.mxu0 0
  %764 = vmatprep.subr.bf16.mxu0 0
  %765 = vmatpush1.bf16.msra.mxu0 0
  %766 = vmatprep.mubr.bf16.mxu0 0
  %767 = vmatmul.mubr.bf16.gmra.mrb[0].mxu0 %v711
  %v768 = vpop.f32.mrb[0].mxu0
  %v769 = vadd.f32 0.0, %v768
  %v770 = vpop.f32.mrb[0].mxu0
  %v771 = vpop.f32.mrb[0].mxu0
  %v772 = vadd.f32 0.0, %v771
  %v773 = vpop.f32.mrb[0].mxu0
  %774 = vmatprep.mubr.bf16.mxu0 0
  %775 = vmatmul.mubr.bf16.gmra.mrb[0].mxu0 %v714
  %v776 = vpop.f32.mrb[0].mxu0
  %v777 = vadd.f32 0.0, %v776
  %v778 = vpop.f32.mrb[0].mxu0
  %v779 = vpop.f32.mrb[0].mxu0
  %v780 = vadd.f32 0.0, %v779
  %v781 = vpop.f32.mrb[0].mxu0
  %782 = vmatprep.mubr.bf16.mxu0 0
  %783 = vmatmul.mubr.bf16.gmra.mrb[0].mxu0 %v717
  %v784 = vpop.f32.mrb[0].mxu0
  %v785 = vadd.f32 0.0, %v784
  %v786 = vpop.f32.mrb[0].mxu0
  %v787 = vpop.f32.mrb[0].mxu0
  %v788 = vadd.f32 0.0, %v787
  %v789 = vpop.f32.mrb[0].mxu0
  %790 = vmatprep.mubr.bf16.mxu0 0
  %791 = vmatmul.mubr.bf16.gmra.mrb[0].mxu0 %v720
  %v792 = vpop.f32.mrb[0].mxu0
  %v793 = vadd.f32 0.0, %v792
  %v794 = vpop.f32.mrb[0].mxu0
  %v795 = vpop.f32.mrb[0].mxu0
  %v796 = vadd.f32 0.0, %v795
  %v797 = vpop.f32.mrb[0].mxu0
  %798 = vmatprep.mubr.bf16.mxu0 0
  %799 = vmatmul.mubr.bf16.gmra.mrb[0].mxu0 %v723
  %v800 = vpop.f32.mrb[0].mxu0
  %v801 = vadd.f32 0.0, %v800
  %v802 = vpop.f32.mrb[0].mxu0
  %v803 = vpop.f32.mrb[0].mxu0
  %v804 = vadd.f32 0.0, %v803
  %v805 = vpop.f32.mrb[0].mxu0
  %806 = vmatprep.mubr.bf16.mxu0 0
  %807 = vmatmul.mubr.bf16.gmra.mrb[0].mxu0 %v726
  %v808 = vpop.f32.mrb[0].mxu0
  %v809 = vadd.f32 0.0, %v808
  %v810 = vpop.f32.mrb[0].mxu0
  %v811 = vpop.f32.mrb[0].mxu0
  %v812 = vadd.f32 0.0, %v811
  %v813 = vpop.f32.mrb[0].mxu0
  %814 = vmatprep.mubr.bf16.mxu0 0
  %815 = vmatmul.mubr.bf16.gmra.mrb[0].mxu0 %v729
  %v816 = vpop.f32.mrb[0].mxu0
  %v817 = vadd.f32 0.0, %v816
  %v818 = vpop.f32.mrb[0].mxu0
  %v819 = vpop.f32.mrb[0].mxu0
  %v820 = vadd.f32 0.0, %v819
  %v821 = vpop.f32.mrb[0].mxu0
  %822 = vmatprep.mubr.bf16.mxu0 0
  %823 = vmatmul.mubr.bf16.gmra.mrb[0].mxu0 %v732
  %v824 = vpop.f32.mrb[0].mxu0
  %v825 = vadd.f32 0.0, %v824
  %v826 = vpop.f32.mrb[0].mxu0
  %v827 = vpop.f32.mrb[0].mxu0
  %v828 = vadd.f32 0.0, %v827
  %v829 = vpop.f32.mrb[0].mxu0
  %830 = vdwg.mxu0
  %v831 = vadd.f32 %v524, %v769
  %v832 = vadd.f32 %v527, %v772
  %v833 = vadd.f32 %v532, %v777
  %v834 = vadd.f32 %v535, %v780
  %v835 = vadd.f32 %v540, %v785
  %v836 = vadd.f32 %v543, %v788
  %v837 = vadd.f32 %v548, %v793
  %v838 = vadd.f32 %v551, %v796
  %v839 = vadd.f32 %v556, %v801
  %v840 = vadd.f32 %v559, %v804
  %v841 = vadd.f32 %v564, %v809
  %v842 = vadd.f32 %v567, %v812
  %v843 = vadd.f32 %v572, %v817
  %v844 = vadd.f32 %v575, %v820
  %v845 = vadd.f32 %v580, %v825
  %v846 = vadd.f32 %v583, %v828
  %v847 = vld [vmem:[%s26 + $0x8] sm:$0x3]
  %v848 = vld [vmem:[%s26 + $0x14] sm:$0x3]
  %v849 = vld [vmem:[%s26 + $0x20] sm:$0x3]
  %v850 = vld [vmem:[%s26 + $0x2c] sm:$0x3]
  %v851 = vld [vmem:[%s26 + $0x38] sm:$0x3]
  %v852 = vld [vmem:[%s26 + $0x44] sm:$0x3]
  %v853 = vld [vmem:[%s26 + $0x50] sm:$0x3]
  %v854 = vld [vmem:[%s26 + $0x5c] sm:$0x3]
  %vm855 = vsmask.f32 2304
  %vm856 = vsmask.f32 6416
  %vm857 = vmor %vm855, %vm856
  %v859 = vshrl.u32 %v586, 16
  %v861 = vrot.slane %v859, 5
  %v862 = vshll.u32 %v586, 16
  %v864 = vrot.slane %v862, 6
  %v865 = vor.u32 %v861, %v864
  %v866 = vrot.slane %v865, 4
  %v867 = vrot.slane %v72, 5
  %v868 = vrot.slane %v68, 6
  %v869 = vor.u32 %v867, %v868
  %v870 = vsel %vm857, %v866, %v869
  %v871 = vrot.slane %v869, 4
  %v873 = vshrl.u32 %v847, 16
  %v875 = vrot.slane %v873, 5
  %v876 = vshll.u32 %v847, 16
  %v878 = vrot.slane %v876, 6
  %v879 = vor.u32 %v875, %v878
  %v880 = vsel %vm857, %v871, %v879
  %v882 = vshrl.u32 %v587, 16
  %v884 = vrot.slane %v882, 5
  %v885 = vshll.u32 %v587, 16
  %v887 = vrot.slane %v885, 6
  %v888 = vor.u32 %v884, %v887
  %v889 = vrot.slane %v888, 4
  %v890 = vrot.slane %v96, 5
  %v891 = vrot.slane %v92, 6
  %v892 = vor.u32 %v890, %v891
  %v893 = vsel %vm857, %v889, %v892
  %v894 = vrot.slane %v892, 4
  %v896 = vshrl.u32 %v848, 16
  %v898 = vrot.slane %v896, 5
  %v899 = vshll.u32 %v848, 16
  %v901 = vrot.slane %v899, 6
  %v902 = vor.u32 %v898, %v901
  %v903 = vsel %vm857, %v894, %v902
  %v905 = vshrl.u32 %v588, 16
  %v907 = vrot.slane %v905, 5
  %v908 = vshll.u32 %v588, 16
  %v910 = vrot.slane %v908, 6
  %v911 = vor.u32 %v907, %v910
  %v912 = vrot.slane %v911, 4
  %v913 = vrot.slane %v120, 5
  %v914 = vrot.slane %v116, 6
  %v915 = vor.u32 %v913, %v914
  %v916 = vsel %vm857, %v912, %v915
  %v917 = vrot.slane %v915, 4
  %v919 = vshrl.u32 %v849, 16
  %v921 = vrot.slane %v919, 5
  %v922 = vshll.u32 %v849, 16
  %v924 = vrot.slane %v922, 6
  %v925 = vor.u32 %v921, %v924
  %v926 = vsel %vm857, %v917, %v925
  %v928 = vshrl.u32 %v589, 16
  %v930 = vrot.slane %v928, 5
  %v931 = vshll.u32 %v589, 16
  %v933 = vrot.slane %v931, 6
  %v934 = vor.u32 %v930, %v933
  %v935 = vrot.slane %v934, 4
  %v936 = vrot.slane %v144, 5
  %v937 = vrot.slane %v140, 6
  %v938 = vor.u32 %v936, %v937
  %v939 = vsel %vm857, %v935, %v938
  %v940 = vrot.slane %v938, 4
  %v942 = vshrl.u32 %v850, 16
  %v944 = vrot.slane %v942, 5
  %v945 = vshll.u32 %v850, 16
  %v947 = vrot.slane %v945, 6
  %v948 = vor.u32 %v944, %v947
  %v949 = vsel %vm857, %v940, %v948
  %v951 = vshrl.u32 %v590, 16
  %v953 = vrot.slane %v951, 5
  %v954 = vshll.u32 %v590, 16
  %v956 = vrot.slane %v954, 6
  %v957 = vor.u32 %v953, %v956
  %v958 = vrot.slane %v957, 4
  %v959 = vrot.slane %v168, 5
  %v960 = vrot.slane %v164, 6
  %v961 = vor.u32 %v959, %v960
  %v962 = vsel %vm857, %v958, %v961
  %v963 = vrot.slane %v961, 4
  %v965 = vshrl.u32 %v851, 16
  %v967 = vrot.slane %v965, 5
  %v968 = vshll.u32 %v851, 16
  %v970 = vrot.slane %v968, 6
  %v971 = vor.u32 %v967, %v970
  %v972 = vsel %vm857, %v963, %v971
  %v974 = vshrl.u32 %v591, 16
  %v976 = vrot.slane %v974, 5
  %v977 = vshll.u32 %v591, 16
  %v979 = vrot.slane %v977, 6
  %v980 = vor.u32 %v976, %v979
  %v981 = vrot.slane %v980, 4
  %v982 = vrot.slane %v192, 5
  %v983 = vrot.slane %v188, 6
  %v984 = vor.u32 %v982, %v983
  %v985 = vsel %vm857, %v981, %v984
  %v986 = vrot.slane %v984, 4
  %v988 = vshrl.u32 %v852, 16
  %v990 = vrot.slane %v988, 5
  %v991 = vshll.u32 %v852, 16
  %v993 = vrot.slane %v991, 6
  %v994 = vor.u32 %v990, %v993
  %v995 = vsel %vm857, %v986, %v994
  %v997 = vshrl.u32 %v592, 16
  %v999 = vrot.slane %v997, 5
  %v1000 = vshll.u32 %v592, 16
  %v1002 = vrot.slane %v1000, 6
  %v1003 = vor.u32 %v999, %v1002
  %v1004 = vrot.slane %v1003, 4
  %v1005 = vrot.slane %v216, 5
  %v1006 = vrot.slane %v212, 6
  %v1007 = vor.u32 %v1005, %v1006
  %v1008 = vsel %vm857, %v1004, %v1007
  %v1009 = vrot.slane %v1007, 4
  %v1011 = vshrl.u32 %v853, 16
  %v1013 = vrot.slane %v1011, 5
  %v1014 = vshll.u32 %v853, 16
  %v1016 = vrot.slane %v1014, 6
  %v1017 = vor.u32 %v1013, %v1016
  %v1018 = vsel %vm857, %v1009, %v1017
  %v1020 = vshrl.u32 %v593, 16
  %v1022 = vrot.slane %v1020, 5
  %v1023 = vshll.u32 %v593, 16
  %v1025 = vrot.slane %v1023, 6
  %v1026 = vor.u32 %v1022, %v1025
  %v1027 = vrot.slane %v1026, 4
  %v1028 = vrot.slane %v240, 5
  %v1029 = vrot.slane %v236, 6
  %v1030 = vor.u32 %v1028, %v1029
  %v1031 = vsel %vm857, %v1027, %v1030
  %v1032 = vrot.slane %v1030, 4
  %v1034 = vshrl.u32 %v854, 16
  %v1036 = vrot.slane %v1034, 5
  %v1037 = vshll.u32 %v854, 16
  %v1039 = vrot.slane %v1037, 6
  %v1040 = vor.u32 %v1036, %v1039
  %v1041 = vsel %vm857, %v1032, %v1040
  %s1042 = scalar_lea.vmem %s1, 48
  %v1043 = vld [vmem:[%s1042] sm:$0xf]
  %v1044 = vld [vmem:[%s1042 + $0x4] sm:$0xf]
  %v1045 = vld [vmem:[%s1042 + $0x8] sm:$0xf]
  %v1046 = vld [vmem:[%s1042 + $0xc] sm:$0xf]
  %v1047 = vunpack.c.l.b16 %v870
  %v1048 = vunpack.c.l.b16 %v880
  %v1049 = vunpack.c.l.b16 %v893
  %v1050 = vunpack.c.l.b16 %v903
  %v1051 = vunpack.c.l.b16 %v916
  %v1052 = vunpack.c.l.b16 %v926
  %v1053 = vunpack.c.l.b16 %v939
  %v1054 = vunpack.c.l.b16 %v949
  %v1055 = vunpack.c.l.b16 %v962
  %v1056 = vunpack.c.l.b16 %v972
  %v1057 = vunpack.c.l.b16 %v985
  %v1058 = vunpack.c.l.b16 %v995
  %v1059 = vunpack.c.l.b16 %v1008
  %v1060 = vunpack.c.l.b16 %v1018
  %v1061 = vunpack.c.l.b16 %v1031
  %v1062 = vunpack.c.l.b16 %v1041
  %v1063 = vpack.c.b16 %v1048, %v1047
  %v1064 = vpack.c.b16 %v1050, %v1049
  %v1065 = vpack.c.b16 %v1052, %v1051
  %v1066 = vpack.c.b16 %v1054, %v1053
  %v1067 = vpack.c.b16 %v1056, %v1055
  %v1068 = vpack.c.b16 %v1058, %v1057
  %v1069 = vpack.c.b16 %v1060, %v1059
  %v1070 = vpack.c.b16 %v1062, %v1061
  %v1075 = vunpack.c.l.b16 %v1043
  %v1076 = vunpack.c.l.b16 %v1044
  %v1077 = vunpack.c.l.b16 %v1045
  %v1078 = vunpack.c.l.b16 %v1046
  %v1079 = vpack.c.b16 %v1076, %v1075
  %v1080 = vpack.c.b16 %v1078, %v1077
  %v1084 = vsel %vm291, %v1063, 0
  %v1087 = vsel %vm291, %v1064, 0
  %v1090 = vsel %vm291, %v1065, 0
  %v1093 = vsel %vm291, %v1066, 0
  %v1096 = vsel %vm291, %v1067, 0
  %v1099 = vsel %vm291, %v1068, 0
  %v1102 = vsel %vm291, %v1069, 0
  %v1105 = vsel %vm291, %v1070, 0
  %1107 = vmatprep.subr.bf16.mxu0 0
  %1108 = vmatpush1.bf16.msra.mxu0 %v1079
  %1109 = vmatprep.subr.bf16.mxu0 0
  %1110 = vmatpush1.bf16.msra.mxu0 %v1080
  %1111 = vmatprep.subr.bf16.mxu0 0
  %1112 = vmatpush1.bf16.msra.mxu0 0
  %1113 = vmatprep.subr.bf16.mxu0 0
  %1114 = vmatpush1.bf16.msra.mxu0 0
  %1115 = vmatprep.subr.bf16.mxu0 0
  %1116 = vmatpush1.bf16.msra.mxu0 0
  %1117 = vmatprep.subr.bf16.mxu0 0
  %1118 = vmatpush1.bf16.msra.mxu0 0
  %1119 = vmatprep.subr.bf16.mxu0 0
  %1120 = vmatpush1.bf16.msra.mxu0 0
  %1121 = vmatprep.subr.bf16.mxu0 0
  %1122 = vmatpush1.bf16.msra.mxu0 0
  %1123 = vmatprep.subr.bf16.mxu0 0
  %1124 = vmatpush1.bf16.msra.mxu0 0
  %1125 = vmatprep.subr.bf16.mxu0 0
  %1126 = vmatpush1.bf16.msra.mxu0 0
  %1127 = vmatprep.subr.bf16.mxu0 0
  %1128 = vmatpush1.bf16.msra.mxu0 0
  %1129 = vmatprep.subr.bf16.mxu0 0
  %1130 = vmatpush1.bf16.msra.mxu0 0
  %1131 = vmatprep.subr.bf16.mxu0 0
  %1132 = vmatpush1.bf16.msra.mxu0 0
  %1133 = vmatprep.subr.bf16.mxu0 0
  %1134 = vmatpush1.bf16.msra.mxu0 0
  %1135 = vmatprep.subr.bf16.mxu0 0
  %1136 = vmatpush1.bf16.msra.mxu0 0
  %1137 = vmatprep.subr.bf16.mxu0 0
  %1138 = vmatpush1.bf16.msra.mxu0 0
  %1139 = vmatprep.mubr.bf16.mxu0 0
  %1140 = vmatmul.mubr.bf16.gmra.mrb[0].mxu0 %v1084
  %v1141 = vpop.f32.mrb[0].mxu0
  %v1142 = vadd.f32 0.0, %v1141
  %v1143 = vpop.f32.mrb[0].mxu0
  %v1144 = vpop.f32.mrb[0].mxu0
  %v1145 = vadd.f32 0.0, %v1144
  %v1146 = vpop.f32.mrb[0].mxu0
  %1147 = vmatprep.mubr.bf16.mxu0 0
  %1148 = vmatmul.mubr.bf16.gmra.mrb[0].mxu0 %v1087
  %v1149 = vpop.f32.mrb[0].mxu0
  %v1150 = vadd.f32 0.0, %v1149
  %v1151 = vpop.f32.mrb[0].mxu0
  %v1152 = vpop.f32.mrb[0].mxu0
  %v1153 = vadd.f32 0.0, %v1152
  %v1154 = vpop.f32.mrb[0].mxu0
  %1155 = vmatprep.mubr.bf16.mxu0 0
  %1156 = vmatmul.mubr.bf16.gmra.mrb[0].mxu0 %v1090
  %v1157 = vpop.f32.mrb[0].mxu0
  %v1158 = vadd.f32 0.0, %v1157
  %v1159 = vpop.f32.mrb[0].mxu0
  %v1160 = vpop.f32.mrb[0].mxu0
  %v1161 = vadd.f32 0.0, %v1160
  %v1162 = vpop.f32.mrb[0].mxu0
  %1163 = vmatprep.mubr.bf16.mxu0 0
  %1164 = vmatmul.mubr.bf16.gmra.mrb[0].mxu0 %v1093
  %v1165 = vpop.f32.mrb[0].mxu0
  %v1166 = vadd.f32 0.0, %v1165
  %v1167 = vpop.f32.mrb[0].mxu0
  %v1168 = vpop.f32.mrb[0].mxu0
  %v1169 = vadd.f32 0.0, %v1168
  %v1170 = vpop.f32.mrb[0].mxu0
  %1171 = vmatprep.mubr.bf16.mxu0 0
  %1172 = vmatmul.mubr.bf16.gmra.mrb[0].mxu0 %v1096
  %v1173 = vpop.f32.mrb[0].mxu0
  %v1174 = vadd.f32 0.0, %v1173
  %v1175 = vpop.f32.mrb[0].mxu0
  %v1176 = vpop.f32.mrb[0].mxu0
  %v1177 = vadd.f32 0.0, %v1176
  %v1178 = vpop.f32.mrb[0].mxu0
  %1179 = vmatprep.mubr.bf16.mxu0 0
  %1180 = vmatmul.mubr.bf16.gmra.mrb[0].mxu0 %v1099
  %v1181 = vpop.f32.mrb[0].mxu0
  %v1182 = vadd.f32 0.0, %v1181
  %v1183 = vpop.f32.mrb[0].mxu0
  %v1184 = vpop.f32.mrb[0].mxu0
  %v1185 = vadd.f32 0.0, %v1184
  %v1186 = vpop.f32.mrb[0].mxu0
  %1187 = vmatprep.mubr.bf16.mxu0 0
  %1188 = vmatmul.mubr.bf16.gmra.mrb[0].mxu0 %v1102
  %v1189 = vpop.f32.mrb[0].mxu0
  %v1190 = vadd.f32 0.0, %v1189
  %v1191 = vpop.f32.mrb[0].mxu0
  %v1192 = vpop.f32.mrb[0].mxu0
  %v1193 = vadd.f32 0.0, %v1192
  %v1194 = vpop.f32.mrb[0].mxu0
  %1195 = vmatprep.mubr.bf16.mxu0 0
  %1196 = vmatmul.mubr.bf16.gmra.mrb[0].mxu0 %v1105
  %v1197 = vpop.f32.mrb[0].mxu0
  %v1198 = vadd.f32 0.0, %v1197
  %v1199 = vpop.f32.mrb[0].mxu0
  %v1200 = vpop.f32.mrb[0].mxu0
  %v1201 = vadd.f32 0.0, %v1200
  %v1202 = vpop.f32.mrb[0].mxu0
  %1203 = vdwg.mxu0
  %v1204 = vadd.f32 %v831, %v1142
  %v1205 = vadd.f32 %v832, %v1145
  %v1206 = vadd.f32 %v833, %v1150
  %v1207 = vadd.f32 %v834, %v1153
  %v1208 = vadd.f32 %v835, %v1158
  %v1209 = vadd.f32 %v836, %v1161
  %v1210 = vadd.f32 %v837, %v1166
  %v1211 = vadd.f32 %v838, %v1169
  %v1212 = vadd.f32 %v839, %v1174
  %v1213 = vadd.f32 %v840, %v1177
  %v1214 = vadd.f32 %v841, %v1182
  %v1215 = vadd.f32 %v842, %v1185
  %v1216 = vadd.f32 %v843, %v1190
  %v1217 = vadd.f32 %v844, %v1193
  %v1218 = vadd.f32 %v845, %v1198
  %v1219 = vadd.f32 %v846, %v1201
  %v1220 = vld [vmem:[%s2] sm:$0x1]
  %v1222 = vlaneseq
  %v1223 = vshrl.u32 %v1222, 7
  %v1224 = vsub.s32 0, %v1223
  %v1225 = vrot.slane %v1220, %v1224
  %v1227 = vadd.f32 %v1204, %v1225
  %v1228 = vadd.f32 %v1205, %v1225
  %v1229 = vadd.f32 %v1206, %v1225
  %v1230 = vadd.f32 %v1207, %v1225
  %v1231 = vadd.f32 %v1208, %v1225
  %v1232 = vadd.f32 %v1209, %v1225
  %v1233 = vadd.f32 %v1210, %v1225
  %v1234 = vadd.f32 %v1211, %v1225
  %v1235 = vadd.f32 %v1212, %v1225
  %v1236 = vadd.f32 %v1213, %v1225
  %v1237 = vadd.f32 %v1214, %v1225
  %v1238 = vadd.f32 %v1215, %v1225
  %v1239 = vadd.f32 %v1216, %v1225
  %v1240 = vadd.f32 %v1217, %v1225
  %v1241 = vadd.f32 %v1218, %v1225
  %v1242 = vadd.f32 %v1219, %v1225
  %v1243 = vmax.f32 %v1227, 0.0
  %v1244 = vmax.f32 %v1228, 0.0
  %v1245 = vmax.f32 %v1229, 0.0
  %v1246 = vmax.f32 %v1230, 0.0
  %v1247 = vmax.f32 %v1231, 0.0
  %v1248 = vmax.f32 %v1232, 0.0
  %v1249 = vmax.f32 %v1233, 0.0
  %v1250 = vmax.f32 %v1234, 0.0
  %v1251 = vmax.f32 %v1235, 0.0
  %v1252 = vmax.f32 %v1236, 0.0
  %v1253 = vmax.f32 %v1237, 0.0
  %v1254 = vmax.f32 %v1238, 0.0
  %v1255 = vmax.f32 %v1239, 0.0
  %v1256 = vmax.f32 %v1240, 0.0
  %v1257 = vmax.f32 %v1241, 0.0
  %v1258 = vmax.f32 %v1242, 0.0
  %v1259 = vld [vmem:[%s3] sm:$0xff]
  %v1260 = vld [vmem:[%s3 + $0x8] sm:$0xff]
  %v1261 = vmul.f32 %v1243, %v1259
  %v1262 = vmul.f32 %v1244, %v1260
  %v1263 = vmul.f32 %v1245, %v1259
  %v1264 = vmul.f32 %v1246, %v1260
  %v1265 = vmul.f32 %v1247, %v1259
  %v1266 = vmul.f32 %v1248, %v1260
  %v1267 = vmul.f32 %v1249, %v1259
  %v1268 = vmul.f32 %v1250, %v1260
  %v1269 = vmul.f32 %v1251, %v1259
  %v1270 = vmul.f32 %v1252, %v1260
  %v1271 = vmul.f32 %v1253, %v1259
  %v1272 = vmul.f32 %v1254, %v1260
  %v1273 = vmul.f32 %v1255, %v1259
  %v1274 = vmul.f32 %v1256, %v1260
  %v1275 = vmul.f32 %v1257, %v1259
  %v1276 = vmul.f32 %v1258, %v1260
  %v1277 = vmax.f32 %v1261, %v1262
  %v1278 = vrot.slane %v1277, 4
  %v1279 = vmax.f32 %v1277, %v1278
  %v1280 = vrot.slane %v1279, 2
  %v1281 = vmax.f32 %v1279, %v1280
  %v1282 = vrot.slane %v1281, 1
  %v1283 = vmax.f32 %v1281, %v1282
  %v1284 = vmax.f32 %v1263, %v1264
  %v1285 = vrot.slane %v1284, 4
  %v1286 = vmax.f32 %v1284, %v1285
  %v1287 = vrot.slane %v1286, 2
  %v1288 = vmax.f32 %v1286, %v1287
  %v1289 = vrot.slane %v1288, 1
  %v1290 = vmax.f32 %v1288, %v1289
  %v1291 = vmax.f32 %v1265, %v1266
  %v1292 = vrot.slane %v1291, 4
  %v1293 = vmax.f32 %v1291, %v1292
  %v1294 = vrot.slane %v1293, 2
  %v1295 = vmax.f32 %v1293, %v1294
  %v1296 = vrot.slane %v1295, 1
  %v1297 = vmax.f32 %v1295, %v1296
  %v1298 = vmax.f32 %v1267, %v1268
  %v1299 = vrot.slane %v1298, 4
  %v1300 = vmax.f32 %v1298, %v1299
  %v1301 = vrot.slane %v1300, 2
  %v1302 = vmax.f32 %v1300, %v1301
  %v1303 = vrot.slane %v1302, 1
  %v1304 = vmax.f32 %v1302, %v1303
  %v1305 = vmax.f32 %v1269, %v1270
  %v1306 = vrot.slane %v1305, 4
  %v1307 = vmax.f32 %v1305, %v1306
  %v1308 = vrot.slane %v1307, 2
  %v1309 = vmax.f32 %v1307, %v1308
  %v1310 = vrot.slane %v1309, 1
  %v1311 = vmax.f32 %v1309, %v1310
  %v1312 = vmax.f32 %v1271, %v1272
  %v1313 = vrot.slane %v1312, 4
  %v1314 = vmax.f32 %v1312, %v1313
  %v1315 = vrot.slane %v1314, 2
  %v1316 = vmax.f32 %v1314, %v1315
  %v1317 = vrot.slane %v1316, 1
  %v1318 = vmax.f32 %v1316, %v1317
  %v1319 = vmax.f32 %v1273, %v1274
  %v1320 = vrot.slane %v1319, 4
  %v1321 = vmax.f32 %v1319, %v1320
  %v1322 = vrot.slane %v1321, 2
  %v1323 = vmax.f32 %v1321, %v1322
  %v1324 = vrot.slane %v1323, 1
  %v1325 = vmax.f32 %v1323, %v1324
  %v1326 = vmax.f32 %v1275, %v1276
  %v1327 = vrot.slane %v1326, 4
  %v1328 = vmax.f32 %v1326, %v1327
  %v1329 = vrot.slane %v1328, 2
  %v1330 = vmax.f32 %v1328, %v1329
  %v1331 = vrot.slane %v1330, 1
  %v1332 = vmax.f32 %v1330, %v1331
  %vm1341 = vcmask 1041409
  %v1342 = vsel %vm1341, %v1290, %v1283
  %vm1343 = vcmask 1042434
  %v1344 = vsel %vm1343, %v1297, %v1342
  %vm1345 = vcmask 1043459
  %v1346 = vsel %vm1345, %v1304, %v1344
  %vm1347 = vcmask 1044484
  %v1348 = vsel %vm1347, %v1311, %v1346
  %vm1349 = vcmask 1045509
  %v1350 = vsel %vm1349, %v1318, %v1348
  %vm1351 = vcmask 1046534
  %v1352 = vsel %vm1351, %v1325, %v1350
  %vm1353 = vcmask 1047559
  %v1354 = vsel %vm1353, %v1332, %v1352
  %1356 = vst [vmem:[#allocation2] sm:$0xff] %v1354
  %v1357 = vld [vmem:[#allocation2] sm:$0xff]
  %v1358 = vld [vmem:[%s4] sm:$0xff]
  %v1359 = vld [vmem:[%s4 + $0x8] sm:$0xff]
  %v1360 = vld [vmem:[%s4 + $0x10] sm:$0xff]
  %v1361 = vld [vmem:[%s4 + $0x18] sm:$0xff]
  %v1362 = vld [vmem:[%s4 + $0x20] sm:$0xff]
  %v1363 = vld [vmem:[%s4 + $0x28] sm:$0xff]
  %v1364 = vld [vmem:[%s4 + $0x30] sm:$0xff]
  %v1365 = vld [vmem:[%s4 + $0x38] sm:$0xff]
  %v1366 = vld [vmem:[%s4 + $0x40] sm:$0xff]
  %v1367 = vld [vmem:[%s4 + $0x48] sm:$0xff]
  %v1368 = vld [vmem:[%s4 + $0x50] sm:$0xff]
  %v1369 = vld [vmem:[%s4 + $0x58] sm:$0xff]
  %v1370 = vld [vmem:[%s4 + $0x60] sm:$0xff]
  %v1371 = vld [vmem:[%s4 + $0x68] sm:$0xff]
  %v1372 = vld [vmem:[%s4 + $0x70] sm:$0xff]
  %v1373 = vld [vmem:[%s4 + $0x78] sm:$0xff]
  %v1374 = vld [vmem:[%s4 + $0x80] sm:$0xff]
  %v1375 = vld [vmem:[%s4 + $0x88] sm:$0xff]
  %v1376 = vld [vmem:[%s4 + $0x90] sm:$0xff]
  %v1377 = vld [vmem:[%s4 + $0x98] sm:$0xff]
  %v1378 = vld [vmem:[%s4 + $0xa0] sm:$0xff]
  %v1379 = vld [vmem:[%s4 + $0xa8] sm:$0xff]
  %v1380 = vld [vmem:[%s4 + $0xb0] sm:$0xff]
  %v1381 = vld [vmem:[%s4 + $0xb8] sm:$0xff]
  %v1382 = vld [vmem:[%s4 + $0xc0] sm:$0xff]
  %v1383 = vld [vmem:[%s4 + $0xc8] sm:$0xff]
  %v1384 = vld [vmem:[%s4 + $0xd0] sm:$0xff]
  %v1385 = vld [vmem:[%s4 + $0xd8] sm:$0xff]
  %v1386 = vld [vmem:[%s4 + $0xe0] sm:$0xff]
  %v1387 = vld [vmem:[%s4 + $0xe8] sm:$0xff]
  %v1388 = vld [vmem:[%s4 + $0xf0] sm:$0xff]
  %v1389 = vld [vmem:[%s4 + $0xf8] sm:$0xff]
  %v1390 = vld [vmem:[%s4 + $0x100] sm:$0xff]
  %v1391 = vld [vmem:[%s4 + $0x108] sm:$0xff]
  %v1392 = vld [vmem:[%s4 + $0x110] sm:$0xff]
  %v1393 = vld [vmem:[%s4 + $0x118] sm:$0xff]
  %v1394 = vld [vmem:[%s4 + $0x120] sm:$0xff]
  %v1395 = vld [vmem:[%s4 + $0x128] sm:$0xff]
  %v1396 = vld [vmem:[%s4 + $0x130] sm:$0xff]
  %v1397 = vld [vmem:[%s4 + $0x138] sm:$0xff]
  %v1398 = vld [vmem:[%s4 + $0x140] sm:$0xff]
  %v1399 = vld [vmem:[%s4 + $0x148] sm:$0xff]
  %v1400 = vld [vmem:[%s4 + $0x150] sm:$0xff]
  %v1401 = vld [vmem:[%s4 + $0x158] sm:$0xff]
  %v1402 = vld [vmem:[%s4 + $0x160] sm:$0xff]
  %v1403 = vld [vmem:[%s4 + $0x168] sm:$0xff]
  %v1404 = vld [vmem:[%s4 + $0x170] sm:$0xff]
  %v1405 = vld [vmem:[%s4 + $0x178] sm:$0xff]
  %v1406 = vld [vmem:[%s4 + $0x180] sm:$0xff]
  %v1407 = vld [vmem:[%s4 + $0x188] sm:$0xff]
  %v1408 = vld [vmem:[%s4 + $0x190] sm:$0xff]
  %v1409 = vld [vmem:[%s4 + $0x198] sm:$0xff]
  %v1410 = vld [vmem:[%s4 + $0x1a0] sm:$0xff]
  %v1411 = vld [vmem:[%s4 + $0x1a8] sm:$0xff]
  %v1412 = vld [vmem:[%s4 + $0x1b0] sm:$0xff]
  %v1413 = vld [vmem:[%s4 + $0x1b8] sm:$0xff]
  %v1414 = vld [vmem:[%s4 + $0x1c0] sm:$0xff]
  %v1415 = vld [vmem:[%s4 + $0x1c8] sm:$0xff]
  %v1416 = vld [vmem:[%s4 + $0x1d0] sm:$0xff]
  %v1417 = vld [vmem:[%s4 + $0x1d8] sm:$0xff]
  %v1418 = vld [vmem:[%s4 + $0x1e0] sm:$0xff]
  %v1419 = vld [vmem:[%s4 + $0x1e8] sm:$0xff]
  %v1420 = vld [vmem:[%s4 + $0x1f0] sm:$0xff]
  %v1421 = vld [vmem:[%s4 + $0x1f8] sm:$0xff]
  %v1422 = vld [vmem:[%s4 + $0x200] sm:$0xff]
  %v1423 = vld [vmem:[%s4 + $0x208] sm:$0xff]
  %v1424 = vld [vmem:[%s4 + $0x210] sm:$0xff]
  %v1425 = vld [vmem:[%s4 + $0x218] sm:$0xff]
  %v1426 = vld [vmem:[%s4 + $0x220] sm:$0xff]
  %v1427 = vld [vmem:[%s4 + $0x228] sm:$0xff]
  %v1428 = vld [vmem:[%s4 + $0x230] sm:$0xff]
  %v1429 = vld [vmem:[%s4 + $0x238] sm:$0xff]
  %v1430 = vld [vmem:[%s4 + $0x240] sm:$0xff]
  %v1431 = vld [vmem:[%s4 + $0x248] sm:$0xff]
  %v1432 = vld [vmem:[%s4 + $0x250] sm:$0xff]
  %v1433 = vld [vmem:[%s4 + $0x258] sm:$0xff]
  %v1434 = vld [vmem:[%s4 + $0x260] sm:$0xff]
  %v1435 = vld [vmem:[%s4 + $0x268] sm:$0xff]
  %v1436 = vld [vmem:[%s4 + $0x270] sm:$0xff]
  %v1437 = vld [vmem:[%s4 + $0x278] sm:$0xff]
  %v1438 = vld [vmem:[%s4 + $0x280] sm:$0xff]
  %v1439 = vld [vmem:[%s4 + $0x288] sm:$0xff]
  %v1440 = vld [vmem:[%s4 + $0x290] sm:$0xff]
  %v1441 = vld [vmem:[%s4 + $0x298] sm:$0xff]
  %v1442 = vld [vmem:[%s4 + $0x2a0] sm:$0xff]
  %v1443 = vld [vmem:[%s4 + $0x2a8] sm:$0xff]
  %v1444 = vld [vmem:[%s4 + $0x2b0] sm:$0xff]
  %v1445 = vld [vmem:[%s4 + $0x2b8] sm:$0xff]
  %v1446 = vld [vmem:[%s4 + $0x2c0] sm:$0xff]
  %v1447 = vld [vmem:[%s4 + $0x2c8] sm:$0xff]
  %v1448 = vld [vmem:[%s4 + $0x2d0] sm:$0xff]
  %v1449 = vld [vmem:[%s4 + $0x2d8] sm:$0xff]
  %v1450 = vld [vmem:[%s4 + $0x2e0] sm:$0xff]
  %v1451 = vld [vmem:[%s4 + $0x2e8] sm:$0xff]
  %v1452 = vld [vmem:[%s4 + $0x2f0] sm:$0xff]
  %v1453 = vld [vmem:[%s4 + $0x2f8] sm:$0xff]
  %v1454 = vld [vmem:[%s5] sm:$0x3f]
  %v1456 = vlaneseq
  %v1457 = vshrl.u32 %v1456, 7
  %v1458 = vsub.s32 0, %v1457
  %v1459 = vrot.slane %v1454, %v1458
  %v1460 = vlaneseq
  %v1461 = vshrl.u32 %v1460, 7
  %v1462 = vsub.s32 1, %v1461
  %v1463 = vrot.slane %v1454, %v1462
  %v1464 = vlaneseq
  %v1465 = vshrl.u32 %v1464, 7
  %v1466 = vsub.s32 2, %v1465
  %v1467 = vrot.slane %v1454, %v1466
  %v1468 = vlaneseq
  %v1469 = vshrl.u32 %v1468, 7
  %v1470 = vsub.s32 3, %v1469
  %v1471 = vrot.slane %v1454, %v1470
  %v1472 = vlaneseq
  %v1473 = vshrl.u32 %v1472, 7
  %v1474 = vsub.s32 4, %v1473
  %v1475 = vrot.slane %v1454, %v1474
  %v1476 = vlaneseq
  %v1477 = vshrl.u32 %v1476, 7
  %v1478 = vsub.s32 5, %v1477
  %v1479 = vrot.slane %v1454, %v1478
  %1486 = vmatprep.subr.mxu0 %v1359
  %1487 = vmatpush1.msra.mxu0 %v1358
  %1488 = vmatprep.subr.mxu0 %v1365
  %1489 = vmatpush1.msra.mxu0 %v1364
  %1490 = vmatprep.subr.mxu0 %v1371
  %1491 = vmatpush1.msra.mxu0 %v1370
  %1492 = vmatprep.subr.mxu0 %v1377
  %1493 = vmatpush1.msra.mxu0 %v1376
  %1494 = vmatprep.subr.mxu0 %v1383
  %1495 = vmatpush1.msra.mxu0 %v1382
  %1496 = vmatprep.subr.mxu0 %v1389
  %1497 = vmatpush1.msra.mxu0 %v1388
  %1498 = vmatprep.subr.mxu0 %v1395
  %1499 = vmatpush1.msra.mxu0 %v1394
  %1500 = vmatprep.subr.mxu0 %v1401
  %1501 = vmatpush1.msra.mxu0 %v1400
  %1502 = vmatprep.subr.mxu0 %v1407
  %1503 = vmatpush1.msra.mxu0 %v1406
  %1504 = vmatprep.subr.mxu0 %v1413
  %1505 = vmatpush1.msra.mxu0 %v1412
  %1506 = vmatprep.subr.mxu0 %v1419
  %1507 = vmatpush1.msra.mxu0 %v1418
  %1508 = vmatprep.subr.mxu0 %v1425
  %1509 = vmatpush1.msra.mxu0 %v1424
  %1510 = vmatprep.subr.mxu0 %v1431
  %1511 = vmatpush1.msra.mxu0 %v1430
  %1512 = vmatprep.subr.mxu0 %v1437
  %1513 = vmatpush1.msra.mxu0 %v1436
  %1514 = vmatprep.subr.mxu0 %v1443
  %1515 = vmatpush1.msra.mxu0 %v1442
  %1516 = vmatprep.subr.mxu0 %v1449
  %1517 = vmatpush1.msra.mxu0 %v1448
  %1518 = vmatprep.subr.mxu0 0.0
  %1519 = vmatpush1.msra.mxu0 0.0
  %1520 = vmatprep.subr.mxu0 0.0
  %1521 = vmatpush1.msra.mxu0 0.0
  %1522 = vmatprep.subr.mxu0 0.0
  %1523 = vmatpush1.msra.mxu0 0.0
  %1524 = vmatprep.subr.mxu0 0.0
  %1525 = vmatpush1.msra.mxu0 0.0
  %1526 = vmatprep.subr.mxu0 0.0
  %1527 = vmatpush1.msra.mxu0 0.0
  %1528 = vmatprep.subr.mxu0 0.0
  %1529 = vmatpush1.msra.mxu0 0.0
  %1530 = vmatprep.subr.mxu0 0.0
  %1531 = vmatpush1.msra.mxu0 0.0
  %1532 = vmatprep.subr.mxu0 0.0
  %1533 = vmatpush1.msra.mxu0 0.0
  %1534 = vmatprep.subr.mxu0 0.0
  %1535 = vmatpush1.msra.mxu0 0.0
  %1536 = vmatprep.subr.mxu0 0.0
  %1537 = vmatpush1.msra.mxu0 0.0
  %1538 = vmatprep.subr.mxu0 0.0
  %1539 = vmatpush1.msra.mxu0 0.0
  %1540 = vmatprep.subr.mxu0 0.0
  %1541 = vmatpush1.msra.mxu0 0.0
  %1542 = vmatprep.subr.mxu0 0.0
  %1543 = vmatpush1.msra.mxu0 0.0
  %1544 = vmatprep.subr.mxu0 0.0
  %1545 = vmatpush1.msra.mxu0 0.0
  %1546 = vmatprep.subr.mxu0 0.0
  %1547 = vmatpush1.msra.mxu0 0.0
  %1548 = vmatprep.subr.mxu0 0.0
  %1549 = vmatpush1.msra.mxu0 0.0
  %1550 = vmatprep.mubr.f32.mxu0 0.0
  %1551 = vmatmul.mubr.f32.gmra.mrb[0].mxu0 %v1357
  %v1552 = vpop.f32.mrb[0].mxu0
  %v1553 = vadd.f32 %v1459, %v1552
  %v1554 = vpop.f32.mrb[0].mxu0
  %v1555 = vadd.f32 %v1463, %v1554
  %1556 = vdwg.mxu0
  %1557 = vmatprep.subr.mxu0 %v1361
  %1558 = vmatpush1.msra.mxu0 %v1360
  %1559 = vmatprep.subr.mxu0 %v1367
  %1560 = vmatpush1.msra.mxu0 %v1366
  %1561 = vmatprep.subr.mxu0 %v1373
  %1562 = vmatpush1.msra.mxu0 %v1372
  %1563 = vmatprep.subr.mxu0 %v1379
  %1564 = vmatpush1.msra.mxu0 %v1378
  %1565 = vmatprep.subr.mxu0 %v1385
  %1566 = vmatpush1.msra.mxu0 %v1384
  %1567 = vmatprep.subr.mxu0 %v1391
  %1568 = vmatpush1.msra.mxu0 %v1390
  %1569 = vmatprep.subr.mxu0 %v1397
  %1570 = vmatpush1.msra.mxu0 %v1396
  %1571 = vmatprep.subr.mxu0 %v1403
  %1572 = vmatpush1.msra.mxu0 %v1402
  %1573 = vmatprep.subr.mxu0 %v1409
  %1574 = vmatpush1.msra.mxu0 %v1408
  %1575 = vmatprep.subr.mxu0 %v1415
  %1576 = vmatpush1.msra.mxu0 %v1414
  %1577 = vmatprep.subr.mxu0 %v1421
  %1578 = vmatpush1.msra.mxu0 %v1420
  %1579 = vmatprep.subr.mxu0 %v1427
  %1580 = vmatpush1.msra.mxu0 %v1426
  %1581 = vmatprep.subr.mxu0 %v1433
  %1582 = vmatpush1.msra.mxu0 %v1432
  %1583 = vmatprep.subr.mxu0 %v1439
  %1584 = vmatpush1.msra.mxu0 %v1438
  %1585 = vmatprep.subr.mxu0 %v1445
  %1586 = vmatpush1.msra.mxu0 %v1444
  %1587 = vmatprep.subr.mxu0 %v1451
  %1588 = vmatpush1.msra.mxu0 %v1450
  %1589 = vmatprep.subr.mxu0 0.0
  %1590 = vmatpush1.msra.mxu0 0.0
  %1591 = vmatprep.subr.mxu0 0.0
  %1592 = vmatpush1.msra.mxu0 0.0
  %1593 = vmatprep.subr.mxu0 0.0
  %1594 = vmatpush1.msra.mxu0 0.0
  %1595 = vmatprep.subr.mxu0 0.0
  %1596 = vmatpush1.msra.mxu0 0.0
  %1597 = vmatprep.subr.mxu0 0.0
  %1598 = vmatpush1.msra.mxu0 0.0
  %1599 = vmatprep.subr.mxu0 0.0
  %1600 = vmatpush1.msra.mxu0 0.0
  %1601 = vmatprep.subr.mxu0 0.0
  %1602 = vmatpush1.msra.mxu0 0.0
  %1603 = vmatprep.subr.mxu0 0.0
  %1604 = vmatpush1.msra.mxu0 0.0
  %1605 = vmatprep.subr.mxu0 0.0
  %1606 = vmatpush1.msra.mxu0 0.0
  %1607 = vmatprep.subr.mxu0 0.0
  %1608 = vmatpush1.msra.mxu0 0.0
  %1609 = vmatprep.subr.mxu0 0.0
  %1610 = vmatpush1.msra.mxu0 0.0
  %1611 = vmatprep.subr.mxu0 0.0
  %1612 = vmatpush1.msra.mxu0 0.0
  %1613 = vmatprep.subr.mxu0 0.0
  %1614 = vmatpush1.msra.mxu0 0.0
  %1615 = vmatprep.subr.mxu0 0.0
  %1616 = vmatpush1.msra.mxu0 0.0
  %1617 = vmatprep.subr.mxu0 0.0
  %1618 = vmatpush1.msra.mxu0 0.0
  %1619 = vmatprep.subr.mxu0 0.0
  %1620 = vmatpush1.msra.mxu0 0.0
  %1621 = vmatprep.mubr.f32.mxu0 0.0
  %1622 = vmatmul.mubr.f32.gmra.mrb[0].mxu0 %v1357
  %v1623 = vpop.f32.mrb[0].mxu0
  %v1624 = vadd.f32 %v1467, %v1623
  %v1625 = vpop.f32.mrb[0].mxu0
  %v1626 = vadd.f32 %v1471, %v1625
  %1627 = vdwg.mxu0
  %1628 = vmatprep.subr.mxu0 %v1363
  %1629 = vmatpush1.msra.mxu0 %v1362
  %1630 = vmatprep.subr.mxu0 %v1369
  %1631 = vmatpush1.msra.mxu0 %v1368
  %1632 = vmatprep.subr.mxu0 %v1375
  %1633 = vmatpush1.msra.mxu0 %v1374
  %1634 = vmatprep.subr.mxu0 %v1381
  %1635 = vmatpush1.msra.mxu0 %v1380
  %1636 = vmatprep.subr.mxu0 %v1387
  %1637 = vmatpush1.msra.mxu0 %v1386
  %1638 = vmatprep.subr.mxu0 %v1393
  %1639 = vmatpush1.msra.mxu0 %v1392
  %1640 = vmatprep.subr.mxu0 %v1399
  %1641 = vmatpush1.msra.mxu0 %v1398
  %1642 = vmatprep.subr.mxu0 %v1405
  %1643 = vmatpush1.msra.mxu0 %v1404
  %1644 = vmatprep.subr.mxu0 %v1411
  %1645 = vmatpush1.msra.mxu0 %v1410
  %1646 = vmatprep.subr.mxu0 %v1417
  %1647 = vmatpush1.msra.mxu0 %v1416
  %1648 = vmatprep.subr.mxu0 %v1423
  %1649 = vmatpush1.msra.mxu0 %v1422
  %1650 = vmatprep.subr.mxu0 %v1429
  %1651 = vmatpush1.msra.mxu0 %v1428
  %1652 = vmatprep.subr.mxu0 %v1435
  %1653 = vmatpush1.msra.mxu0 %v1434
  %1654 = vmatprep.subr.mxu0 %v1441
  %1655 = vmatpush1.msra.mxu0 %v1440
  %1656 = vmatprep.subr.mxu0 %v1447
  %1657 = vmatpush1.msra.mxu0 %v1446
  %1658 = vmatprep.subr.mxu0 %v1453
  %1659 = vmatpush1.msra.mxu0 %v1452
  %1660 = vmatprep.subr.mxu0 0.0
  %1661 = vmatpush1.msra.mxu0 0.0
  %1662 = vmatprep.subr.mxu0 0.0
  %1663 = vmatpush1.msra.mxu0 0.0
  %1664 = vmatprep.subr.mxu0 0.0
  %1665 = vmatpush1.msra.mxu0 0.0
  %1666 = vmatprep.subr.mxu0 0.0
  %1667 = vmatpush1.msra.mxu0 0.0
  %1668 = vmatprep.subr.mxu0 0.0
  %1669 = vmatpush1.msra.mxu0 0.0
  %1670 = vmatprep.subr.mxu0 0.0
  %1671 = vmatpush1.msra.mxu0 0.0
  %1672 = vmatprep.subr.mxu0 0.0
  %1673 = vmatpush1.msra.mxu0 0.0
  %1674 = vmatprep.subr.mxu0 0.0
  %1675 = vmatpush1.msra.mxu0 0.0
  %1676 = vmatprep.subr.mxu0 0.0
  %1677 = vmatpush1.msra.mxu0 0.0
  %1678 = vmatprep.subr.mxu0 0.0
  %1679 = vmatpush1.msra.mxu0 0.0
  %1680 = vmatprep.subr.mxu0 0.0
  %1681 = vmatpush1.msra.mxu0 0.0
  %1682 = vmatprep.subr.mxu0 0.0
  %1683 = vmatpush1.msra.mxu0 0.0
  %1684 = vmatprep.subr.mxu0 0.0
  %1685 = vmatpush1.msra.mxu0 0.0
  %1686 = vmatprep.subr.mxu0 0.0
  %1687 = vmatpush1.msra.mxu0 0.0
  %1688 = vmatprep.subr.mxu0 0.0
  %1689 = vmatpush1.msra.mxu0 0.0
  %1690 = vmatprep.subr.mxu0 0.0
  %1691 = vmatpush1.msra.mxu0 0.0
  %1692 = vmatprep.mubr.f32.mxu0 0.0
  %1693 = vmatmul.mubr.f32.gmra.mrb[0].mxu0 %v1357
  %v1694 = vpop.f32.mrb[0].mxu0
  %v1695 = vadd.f32 %v1475, %v1694
  %v1696 = vpop.f32.mrb[0].mxu0
  %v1697 = vadd.f32 %v1479, %v1696
  %1698 = vdwg.mxu0
  %1699 = vst [vmem:[%s6] sm:$0xff] %v1553
  %1700 = vst [vmem:[%s6 + $0x8] sm:$0xff] %v1555
  %1701 = vst [vmem:[%s6 + $0x10] sm:$0xff] %v1624
  %1702 = vst [vmem:[%s6 + $0x18] sm:$0xff] %v1626
  %1703 = vst [vmem:[%s6 + $0x20] sm:$0xff] %v1695
  %1704 = vst [vmem:[%s6 + $0x28] sm:$0xff] %v1697
  // Predicated region
  $region26: #{charcnn_forward.1} parent=0 // pred_check
    _
  $region27: #{charcnn_forward.1} parent=0 // pred_check_branch
    %1706 = sbr.rel (0) target = $region29
  $region28: #{charcnn_forward.1} parent=0 // pred_region
    _
  $region29: #{charcnn_forward.1} parent=0 // pred_fallthru
    _
  // Predicated region
  $region30: #{charcnn_forward.1} parent=0 // pred_check
    _
  $region31: #{charcnn_forward.1} parent=0 // pred_check_branch
    %1708 = sbr.rel (0) target = $region33
  $region32: #{charcnn_forward.1} parent=0 // pred_region
    _
  $region33: #{charcnn_forward.1} parent=0 // pred_fallthru
    _

</llo_original>
